<compile_context>
chip_gen: v5e
topology: v5e:2x2
jax: 0.10.0
libtpu: 0.0.40
codegen_flags: <defaults>
</compile_context>

<pallas_src>
import jax
import jax.numpy as jnp
from jax.experimental import pallas as pl
from jax.experimental.pallas import tpu as pltpu

C_IN = 4        # in_channel of the module (EV / light_feature channels)
C_HID = 16      # hidden_channel
H = W = 16      # spatial size
NEG_SLOPE = 0.2

# tap offsets (oy, ox) in PyTorch cross-correlation order: t = ky*3 + kx
_TAP_OFFSETS = tuple((ky - 1, kx - 1) for ky in range(3) for kx in range(3))
_CENTER_TAP = 4  # (0, 0)


def _make_kernel(B, Hh, Ww, cin, cpad, chid):
    HW = Hh * Ww
    L = B * HW
    # pltpu.roll == jnp.roll semantics: roll(x, s)[i] = x[(i - s) % L].
    # We want shifted[i] = x[(i + d) % L]  =>  s = (-d) % L.
    shifts = tuple(((-(oy * Ww + ox)) % L) for (oy, ox) in _TAP_OFFSETS)

    def kernel(x_ref, ev_ref, m_ref, w1_ref, b1_ref, w2_ref, b2_ref,
               w3_ref, b3_ref, o_ref):
        f32 = jnp.float32
        masks = m_ref[...]                                # (9, L)

        def leaky(v):
            return jnp.where(v > 0, v, NEG_SLOPE * v)

        def tap(act, t):
            # act[:, j + d_t], zeroed outside the image (border mask kills any
            # cross-row / cross-image lane wraparound).
            if t == _CENTER_TAP:
                return act
            return pltpu.roll(act, shifts[t], axis=1) * masks[t:t + 1, :]

        # ---- layer 1: Conv(cin -> chid) + LeakyReLU, one MXU matmul K=9*cpad
        x = x_ref[...]                                    # (cpad, L), rows>=cin are 0
        stack1 = jnp.concatenate([tap(x, t) for t in range(9)], axis=0)
        h1 = leaky(jnp.dot(w1_ref[...], stack1,
                           preferred_element_type=f32) + b1_ref[...])   # (chid, L)

        # ---- layer 2: Conv(chid -> chid) + LeakyReLU, K split in 3 chunks of 3 taps
        acc = None
        for ci in range(3):
            chunk = jnp.concatenate([tap(h1, 3 * ci + k) for k in range(3)],
                                    axis=0)               # (3*chid, L)
            part = jnp.dot(w2_ref[ci], chunk, preferred_element_type=f32)
            acc = part if acc is None else acc + part
        h2 = leaky(acc + b2_ref[...])                     # (chid, L)

        # ---- layer 3: Conv(chid -> 1) as Z = W3_tapmajor @ h2, then masked
        #      lane-rolls + sum (no restack, no M=1 matmul).
        z = jnp.dot(w3_ref[...], h2, preferred_element_type=f32)        # (9, L)
        net = z[_CENTER_TAP:_CENTER_TAP + 1, :]
        for t in range(9):
            if t == _CENTER_TAP:
                continue
            net = net + pltpu.roll(z[t:t + 1, :], shifts[t], axis=1) * masks[t:t + 1, :]
        net = net + b3_ref[...]                           # (1, L)

        # ---- residual: out[b*cin + c, :] = net[b*HW:(b+1)*HW] + EV[c, :]
        parts = [jnp.broadcast_to(net[:, b * HW:(b + 1) * HW], (cin, HW))
                 for b in range(B)]
        o_ref[...] = jnp.concatenate(parts, axis=0) + ev_ref[...]

    return kernel


def lightness_mapper(EV, light_feature, params):
    """EV, light_feature: NCHW float32 (EV batch = 1, as the module uses it).
    Returns NCHW: net(cat([EV, light_feature], dim=0)) + EV (broadcast)."""
    x_nchw = jnp.concatenate([EV, light_feature], axis=0).astype(jnp.float32)
    B, cin, Hh, Ww = x_nchw.shape
    HW = Hh * Ww
    L = B * HW
    chid = params["w1"].shape[-1]
    cpad = max(8, -(-cin // 8) * 8)   # pad in-channels to an 8-sublane multiple

    # lane-dense layouts: flattened (batch*H*W) spatial axis rides the lanes
    x_cm = jnp.transpose(x_nchw, (1, 0, 2, 3)).reshape(cin, L)       # (cin, L)
    x_pad = jnp.zeros((cpad, L), jnp.float32).at[:cin].set(x_cm)     # (cpad, L)
    ev_tiled = jnp.tile(EV.astype(jnp.float32).reshape(cin, HW), (B, 1))  # (B*cin, HW)

    # static border masks for the 9 taps, hoisted out of the kernel: (9, L)
    lane = jnp.arange(L, dtype=jnp.int32)
    col = lane % Ww
    row = (lane // Ww) % Hh
    masks = jnp.stack(
        [((row + oy >= 0) & (row + oy < Hh) &
          (col + ox >= 0) & (col + ox < Ww)).astype(jnp.float32)
         for (oy, ox) in _TAP_OFFSETS], axis=0)

    def fold_w1(w):   # HWIO (3,3,cin,chid) -> (chid, 9*cpad), tap-major, cin zero-padded
        cout = w.shape[-1]
        wt = jnp.transpose(w, (3, 0, 1, 2))                          # (chid,3,3,cin)
        wt = jnp.pad(wt, ((0, 0), (0, 0), (0, 0), (0, cpad - cin)))
        return wt.reshape(cout, 9 * cpad).astype(jnp.float32)

    def fold_w2(w):   # HWIO (3,3,chid,chid) -> (3, chid, 3*chid): 3 tap-chunks of 3
        cout = w.shape[-1]
        wt = jnp.transpose(w, (3, 0, 1, 2)).reshape(cout, 9 * chid)  # tap-major cols
        return jnp.transpose(wt.reshape(cout, 3, 3 * chid), (1, 0, 2)).astype(jnp.float32)

    def fold_w3(w):   # HWIO (3,3,chid,1) -> (9, chid), tap-major rows
        return jnp.transpose(w, (3, 0, 1, 2)).reshape(9, chid).astype(jnp.float32)

    def fold_b(b):    # (1, cout) -> (cout, 1) for lane broadcast
        return b.reshape(-1, 1).astype(jnp.float32)

    kernel = _make_kernel(B, Hh, Ww, cin, cpad, chid)

    out = pl.pallas_call(
        kernel,
        out_shape=jax.ShapeDtypeStruct((B * cin, HW), jnp.float32),
        in_specs=[pl.BlockSpec(memory_space=pltpu.MemorySpace.VMEM)] * 9,
        out_specs=pl.BlockSpec(memory_space=pltpu.MemorySpace.VMEM),
        # Gridless on purpose: single TC (v5e/v6e). For v7x, shard grid=(B,)
        # with dimension_semantics=("parallel",) or batch more images per call.
    )(x_pad, ev_tiled, masks,
      fold_w1(params["w1"]), fold_b(params["b1"]),
      fold_w2(params["w2"]), fold_b(params["b2"]),
      fold_w3(params["w3"]), fold_b(params["b3"]))

    return out.reshape(B, cin, Hh, Ww)                               # NCHW


# ---------------- pure-JAX reference for correctness check ----------------
def ref_forward(EV, LF, params):
    x = jnp.transpose(jnp.concatenate([EV, LF], axis=0), (0, 2, 3, 1))
    ev = jnp.transpose(EV, (0, 2, 3, 1))

    def conv(v, w, b):
        y = jax.lax.conv_general_dilated(
            v, w, (1, 1), "SAME",
            dimension_numbers=("NHWC", "HWIO", "NHWC"),
            precision=jax.lax.Precision.HIGHEST)
        return y + b.reshape(1, 1, 1, -1)

    def leaky(v):
        return jnp.where(v > 0, v, NEG_SLOPE * v)

    h = leaky(conv(x, params["w1"], params["b1"]))
    h = leaky(conv(h, params["w2"], params["b2"]))
    y = conv(h, params["w3"], params["b3"]) + ev
    return jnp.transpose(y, (0, 3, 1, 2))


def init_conv(key, cin, cout):
    kw, kb = jax.random.split(key)
    scale = 1.0 / jnp.sqrt(cin * 9.0)          # Conv2d default-style fan-in init
    w = jax.random.uniform(kw, (3, 3, cin, cout), jnp.float32, -scale, scale)
    b = jax.random.uniform(kb, (1, cout), jnp.float32, -scale, scale)
    return w, b


if __name__ == "__main__":
    key = jax.random.PRNGKey(0)
    k1, k2, k3, kev, klf = jax.random.split(key, 5)

    w1, b1 = init_conv(k1, C_IN, C_HID)
    w2, b2 = init_conv(k2, C_HID, C_HID)
    w3, b3 = init_conv(k3, C_HID, 1)
    params = {"w1": w1, "b1": b1, "w2": w2, "b2": b2, "w3": w3, "b3": b3}

    # EV and light_feature both have in_channel channels (they are concatenated
    # along the batch dim before entering the conv stack).
    EV = jax.random.normal(kev, (1, C_IN, H, W), jnp.float32)
    LF = jax.random.normal(klf, (1, C_IN, H, W), jnp.float32)

    out = jax.block_until_ready(lightness_mapper(EV, LF, params))

    ref = ref_forward(EV, LF, params)
    assert out.shape == (2, C_IN, H, W), out.shape
    max_err = float(jnp.max(jnp.abs(out - ref)))
    assert bool(jnp.allclose(out, ref, atol=1e-4, rtol=1e-4)), max_err

    print("KERNEL_OK")
</pallas_src>

<mosaic_0001>
module attributes {stable_mosaic.version = 11 : i64} {
  func.func @kernel(%arg0: memref<8x512xf32, #tpu.memory_space<vmem>>, %arg1: memref<8x256xf32, #tpu.memory_space<vmem>>, %arg2: memref<9x512xf32, #tpu.memory_space<vmem>>, %arg3: memref<16x72xf32, #tpu.memory_space<vmem>>, %arg4: memref<16x1xf32, #tpu.memory_space<vmem>>, %arg5: memref<3x16x48xf32, #tpu.memory_space<vmem>>, %arg6: memref<16x1xf32, #tpu.memory_space<vmem>>, %arg7: memref<9x16xf32, #tpu.memory_space<vmem>>, %arg8: memref<1x1xf32, #tpu.memory_space<vmem>>, %arg9: memref<8x256xf32, #tpu.memory_space<vmem>>) attributes {dimension_semantics = [], scalar_prefetch = 0 : i64, scratch_operands = 0 : i64, tpu.core_type = #tpu.core_type<tc>} {
    %c0 = arith.constant 0 : index
    %c0_0 = arith.constant 0 : index
    %0 = vector.load %arg2[%c0, %c0_0] : memref<9x512xf32, #tpu.memory_space<vmem>>, vector<9x512xf32>
    %c0_1 = arith.constant 0 : index
    %c0_2 = arith.constant 0 : index
    %1 = vector.load %arg0[%c0_1, %c0_2] : memref<8x512xf32, #tpu.memory_space<vmem>>, vector<8x512xf32>
    %c17_i32 = arith.constant 17 : i32
    %2 = tpu.dynamic_rotate %1 by %c17_i32 dim 1 : vector<8x512xf32>, i32 -> vector<8x512xf32>
    %3 = vector.extract_strided_slice %0 {offsets = [0, 0], sizes = [1, 512], strides = [1, 1]} : vector<9x512xf32> to vector<1x512xf32>
    %4 = vector.broadcast %3 : vector<1x512xf32> to vector<8x512xf32>
    %5 = arith.mulf %2, %4 : vector<8x512xf32>
    %c16_i32 = arith.constant 16 : i32
    %6 = tpu.dynamic_rotate %1 by %c16_i32 dim 1 : vector<8x512xf32>, i32 -> vector<8x512xf32>
    %7 = vector.extract_strided_slice %0 {offsets = [1, 0], sizes = [1, 512], strides = [1, 1]} : vector<9x512xf32> to vector<1x512xf32>
    %8 = vector.broadcast %7 : vector<1x512xf32> to vector<8x512xf32>
    %9 = arith.mulf %6, %8 : vector<8x512xf32>
    %c15_i32 = arith.constant 15 : i32
    %10 = tpu.dynamic_rotate %1 by %c15_i32 dim 1 : vector<8x512xf32>, i32 -> vector<8x512xf32>
    %11 = vector.extract_strided_slice %0 {offsets = [2, 0], sizes = [1, 512], strides = [1, 1]} : vector<9x512xf32> to vector<1x512xf32>
    %12 = vector.broadcast %11 : vector<1x512xf32> to vector<8x512xf32>
    %13 = arith.mulf %10, %12 : vector<8x512xf32>
    %c1_i32 = arith.constant 1 : i32
    %14 = tpu.dynamic_rotate %1 by %c1_i32 dim 1 : vector<8x512xf32>, i32 -> vector<8x512xf32>
    %15 = vector.extract_strided_slice %0 {offsets = [3, 0], sizes = [1, 512], strides = [1, 1]} : vector<9x512xf32> to vector<1x512xf32>
    %16 = vector.broadcast %15 : vector<1x512xf32> to vector<8x512xf32>
    %17 = arith.mulf %14, %16 : vector<8x512xf32>
    %c511_i32 = arith.constant 511 : i32
    %18 = tpu.dynamic_rotate %1 by %c511_i32 dim 1 : vector<8x512xf32>, i32 -> vector<8x512xf32>
    %19 = vector.extract_strided_slice %0 {offsets = [5, 0], sizes = [1, 512], strides = [1, 1]} : vector<9x512xf32> to vector<1x512xf32>
    %20 = vector.broadcast %19 : vector<1x512xf32> to vector<8x512xf32>
    %21 = arith.mulf %18, %20 : vector<8x512xf32>
    %c497_i32 = arith.constant 497 : i32
    %22 = tpu.dynamic_rotate %1 by %c497_i32 dim 1 : vector<8x512xf32>, i32 -> vector<8x512xf32>
    %23 = vector.extract_strided_slice %0 {offsets = [6, 0], sizes = [1, 512], strides = [1, 1]} : vector<9x512xf32> to vector<1x512xf32>
    %24 = vector.broadcast %23 : vector<1x512xf32> to vector<8x512xf32>
    %25 = arith.mulf %22, %24 : vector<8x512xf32>
    %c496_i32 = arith.constant 496 : i32
    %26 = tpu.dynamic_rotate %1 by %c496_i32 dim 1 : vector<8x512xf32>, i32 -> vector<8x512xf32>
    %27 = vector.extract_strided_slice %0 {offsets = [7, 0], sizes = [1, 512], strides = [1, 1]} : vector<9x512xf32> to vector<1x512xf32>
    %28 = vector.broadcast %27 : vector<1x512xf32> to vector<8x512xf32>
    %29 = arith.mulf %26, %28 : vector<8x512xf32>
    %c495_i32 = arith.constant 495 : i32
    %30 = tpu.dynamic_rotate %1 by %c495_i32 dim 1 : vector<8x512xf32>, i32 -> vector<8x512xf32>
    %31 = vector.extract_strided_slice %0 {offsets = [8, 0], sizes = [1, 512], strides = [1, 1]} : vector<9x512xf32> to vector<1x512xf32>
    %32 = vector.broadcast %31 : vector<1x512xf32> to vector<8x512xf32>
    %33 = arith.mulf %30, %32 : vector<8x512xf32>
    %34 = tpu.concatenate %5, %9, %13, %17, %1, %21, %25, %29, %33 in 0 : vector<8x512xf32>, vector<8x512xf32>, vector<8x512xf32>, vector<8x512xf32>, vector<8x512xf32>, vector<8x512xf32>, vector<8x512xf32>, vector<8x512xf32>, vector<8x512xf32> -> vector<72x512xf32>
    %c0_3 = arith.constant 0 : index
    %c0_4 = arith.constant 0 : index
    %35 = vector.load %arg3[%c0_3, %c0_4] : memref<16x72xf32, #tpu.memory_space<vmem>>, vector<16x72xf32>
    %cst = arith.constant dense<0.000000e+00> : vector<16x512xf32>
    %36 = tpu.matmul %35, %34, %cst {dimension_numbers = #tpu.dot_dimension_numbers<[1], [0], [0], [1], [0, 0, 1, 1], [], []>} : vector<16x72xf32>, vector<72x512xf32>, vector<16x512xf32> -> vector<16x512xf32>
    %c0_5 = arith.constant 0 : index
    %c0_6 = arith.constant 0 : index
    %37 = vector.load %arg4[%c0_5, %c0_6] : memref<16x1xf32, #tpu.memory_space<vmem>>, vector<16x1xf32>
    %38 = vector.broadcast %37 : vector<16x1xf32> to vector<16x512xf32>
    %39 = arith.addf %36, %38 : vector<16x512xf32>
    %cst_7 = arith.constant 0.000000e+00 : f32
    %40 = vector.broadcast %cst_7 : f32 to vector<16x512xf32>
    %41 = arith.cmpf ogt, %39, %40 : vector<16x512xf32>
    %cst_8 = arith.constant 2.000000e-01 : f32
    %42 = vector.broadcast %cst_8 : f32 to vector<16x512xf32>
    %43 = arith.mulf %42, %39 : vector<16x512xf32>
    %44 = arith.select %41, %39, %43 : vector<16x512xi1>, vector<16x512xf32>
    %c17_i32_9 = arith.constant 17 : i32
    %45 = tpu.dynamic_rotate %44 by %c17_i32_9 dim 1 : vector<16x512xf32>, i32 -> vector<16x512xf32>
    %46 = vector.extract_strided_slice %0 {offsets = [0, 0], sizes = [1, 512], strides = [1, 1]} : vector<9x512xf32> to vector<1x512xf32>
    %47 = vector.broadcast %46 : vector<1x512xf32> to vector<16x512xf32>
    %48 = arith.mulf %45, %47 : vector<16x512xf32>
    %c16_i32_10 = arith.constant 16 : i32
    %49 = tpu.dynamic_rotate %44 by %c16_i32_10 dim 1 : vector<16x512xf32>, i32 -> vector<16x512xf32>
    %50 = vector.extract_strided_slice %0 {offsets = [1, 0], sizes = [1, 512], strides = [1, 1]} : vector<9x512xf32> to vector<1x512xf32>
    %51 = vector.broadcast %50 : vector<1x512xf32> to vector<16x512xf32>
    %52 = arith.mulf %49, %51 : vector<16x512xf32>
    %c15_i32_11 = arith.constant 15 : i32
    %53 = tpu.dynamic_rotate %44 by %c15_i32_11 dim 1 : vector<16x512xf32>, i32 -> vector<16x512xf32>
    %54 = vector.extract_strided_slice %0 {offsets = [2, 0], sizes = [1, 512], strides = [1, 1]} : vector<9x512xf32> to vector<1x512xf32>
    %55 = vector.broadcast %54 : vector<1x512xf32> to vector<16x512xf32>
    %56 = arith.mulf %53, %55 : vector<16x512xf32>
    %57 = tpu.concatenate %48, %52, %56 in 0 : vector<16x512xf32>, vector<16x512xf32>, vector<16x512xf32> -> vector<48x512xf32>
    %c0_12 = arith.constant 0 : index
    %c0_13 = arith.constant 0 : index
    %c0_14 = arith.constant 0 : index
    %58 = vector.load %arg5[%c0_12, %c0_13, %c0_14] : memref<3x16x48xf32, #tpu.memory_space<vmem>>, vector<1x16x48xf32>
    %59 = vector.shape_cast %58 : vector<1x16x48xf32> to vector<16x48xf32>
    %cst_15 = arith.constant dense<0.000000e+00> : vector<16x512xf32>
    %60 = tpu.matmul %59, %57, %cst_15 {dimension_numbers = #tpu.dot_dimension_numbers<[1], [0], [0], [1], [0, 0, 1, 1], [], []>} : vector<16x48xf32>, vector<48x512xf32>, vector<16x512xf32> -> vector<16x512xf32>
    %c1_i32_16 = arith.constant 1 : i32
    %61 = tpu.dynamic_rotate %44 by %c1_i32_16 dim 1 : vector<16x512xf32>, i32 -> vector<16x512xf32>
    %62 = vector.extract_strided_slice %0 {offsets = [3, 0], sizes = [1, 512], strides = [1, 1]} : vector<9x512xf32> to vector<1x512xf32>
    %63 = vector.broadcast %62 : vector<1x512xf32> to vector<16x512xf32>
    %64 = arith.mulf %61, %63 : vector<16x512xf32>
    %c511_i32_17 = arith.constant 511 : i32
    %65 = tpu.dynamic_rotate %44 by %c511_i32_17 dim 1 : vector<16x512xf32>, i32 -> vector<16x512xf32>
    %66 = vector.extract_strided_slice %0 {offsets = [5, 0], sizes = [1, 512], strides = [1, 1]} : vector<9x512xf32> to vector<1x512xf32>
    %67 = vector.broadcast %66 : vector<1x512xf32> to vector<16x512xf32>
    %68 = arith.mulf %65, %67 : vector<16x512xf32>
    %69 = tpu.concatenate %64, %44, %68 in 0 : vector<16x512xf32>, vector<16x512xf32>, vector<16x512xf32> -> vector<48x512xf32>
    %c1 = arith.constant 1 : index
    %c0_18 = arith.constant 0 : index
    %c0_19 = arith.constant 0 : index
    %70 = vector.load %arg5[%c1, %c0_18, %c0_19] : memref<3x16x48xf32, #tpu.memory_space<vmem>>, vector<1x16x48xf32>
    %71 = vector.shape_cast %70 : vector<1x16x48xf32> to vector<16x48xf32>
    %cst_20 = arith.constant dense<0.000000e+00> : vector<16x512xf32>
    %72 = tpu.matmul %71, %69, %cst_20 {dimension_numbers = #tpu.dot_dimension_numbers<[1], [0], [0], [1], [0, 0, 1, 1], [], []>} : vector<16x48xf32>, vector<48x512xf32>, vector<16x512xf32> -> vector<16x512xf32>
    %73 = arith.addf %60, %72 : vector<16x512xf32>
    %c497_i32_21 = arith.constant 497 : i32
    %74 = tpu.dynamic_rotate %44 by %c497_i32_21 dim 1 : vector<16x512xf32>, i32 -> vector<16x512xf32>
    %75 = vector.extract_strided_slice %0 {offsets = [6, 0], sizes = [1, 512], strides = [1, 1]} : vector<9x512xf32> to vector<1x512xf32>
    %76 = vector.broadcast %75 : vector<1x512xf32> to vector<16x512xf32>
    %77 = arith.mulf %74, %76 : vector<16x512xf32>
    %c496_i32_22 = arith.constant 496 : i32
    %78 = tpu.dynamic_rotate %44 by %c496_i32_22 dim 1 : vector<16x512xf32>, i32 -> vector<16x512xf32>
    %79 = vector.extract_strided_slice %0 {offsets = [7, 0], sizes = [1, 512], strides = [1, 1]} : vector<9x512xf32> to vector<1x512xf32>
    %80 = vector.broadcast %79 : vector<1x512xf32> to vector<16x512xf32>
    %81 = arith.mulf %78, %80 : vector<16x512xf32>
    %c495_i32_23 = arith.constant 495 : i32
    %82 = tpu.dynamic_rotate %44 by %c495_i32_23 dim 1 : vector<16x512xf32>, i32 -> vector<16x512xf32>
    %83 = vector.extract_strided_slice %0 {offsets = [8, 0], sizes = [1, 512], strides = [1, 1]} : vector<9x512xf32> to vector<1x512xf32>
    %84 = vector.broadcast %83 : vector<1x512xf32> to vector<16x512xf32>
    %85 = arith.mulf %82, %84 : vector<16x512xf32>
    %86 = tpu.concatenate %77, %81, %85 in 0 : vector<16x512xf32>, vector<16x512xf32>, vector<16x512xf32> -> vector<48x512xf32>
    %c2 = arith.constant 2 : index
    %c0_24 = arith.constant 0 : index
    %c0_25 = arith.constant 0 : index
    %87 = vector.load %arg5[%c2, %c0_24, %c0_25] : memref<3x16x48xf32, #tpu.memory_space<vmem>>, vector<1x16x48xf32>
    %88 = vector.shape_cast %87 : vector<1x16x48xf32> to vector<16x48xf32>
    %cst_26 = arith.constant dense<0.000000e+00> : vector<16x512xf32>
    %89 = tpu.matmul %88, %86, %cst_26 {dimension_numbers = #tpu.dot_dimension_numbers<[1], [0], [0], [1], [0, 0, 1, 1], [], []>} : vector<16x48xf32>, vector<48x512xf32>, vector<16x512xf32> -> vector<16x512xf32>
    %90 = arith.addf %73, %89 : vector<16x512xf32>
    %c0_27 = arith.constant 0 : index
    %c0_28 = arith.constant 0 : index
    %91 = vector.load %arg6[%c0_27, %c0_28] : memref<16x1xf32, #tpu.memory_space<vmem>>, vector<16x1xf32>
    %92 = vector.broadcast %91 : vector<16x1xf32> to vector<16x512xf32>
    %93 = arith.addf %90, %92 : vector<16x512xf32>
    %cst_29 = arith.constant 0.000000e+00 : f32
    %94 = vector.broadcast %cst_29 : f32 to vector<16x512xf32>
    %95 = arith.cmpf ogt, %93, %94 : vector<16x512xf32>
    %cst_30 = arith.constant 2.000000e-01 : f32
    %96 = vector.broadcast %cst_30 : f32 to vector<16x512xf32>
    %97 = arith.mulf %96, %93 : vector<16x512xf32>
    %98 = arith.select %95, %93, %97 : vector<16x512xi1>, vector<16x512xf32>
    %c0_31 = arith.constant 0 : index
    %c0_32 = arith.constant 0 : index
    %99 = vector.load %arg7[%c0_31, %c0_32] : memref<9x16xf32, #tpu.memory_space<vmem>>, vector<9x16xf32>
    %cst_33 = arith.constant dense<0.000000e+00> : vector<9x512xf32>
    %100 = tpu.matmul %99, %98, %cst_33 {dimension_numbers = #tpu.dot_dimension_numbers<[1], [0], [0], [1], [0, 0, 1, 1], [], []>} : vector<9x16xf32>, vector<16x512xf32>, vector<9x512xf32> -> vector<9x512xf32>
    %101 = vector.extract_strided_slice %100 {offsets = [4, 0], sizes = [1, 512], strides = [1, 1]} : vector<9x512xf32> to vector<1x512xf32>
    %102 = vector.extract_strided_slice %100 {offsets = [0, 0], sizes = [1, 512], strides = [1, 1]} : vector<9x512xf32> to vector<1x512xf32>
    %c17_i32_34 = arith.constant 17 : i32
    %103 = tpu.dynamic_rotate %102 by %c17_i32_34 dim 1 : vector<1x512xf32>, i32 -> vector<1x512xf32>
    %104 = vector.extract_strided_slice %0 {offsets = [0, 0], sizes = [1, 512], strides = [1, 1]} : vector<9x512xf32> to vector<1x512xf32>
    %105 = arith.mulf %103, %104 : vector<1x512xf32>
    %106 = arith.addf %101, %105 : vector<1x512xf32>
    %107 = vector.extract_strided_slice %100 {offsets = [1, 0], sizes = [1, 512], strides = [1, 1]} : vector<9x512xf32> to vector<1x512xf32>
    %c16_i32_35 = arith.constant 16 : i32
    %108 = tpu.dynamic_rotate %107 by %c16_i32_35 dim 1 : vector<1x512xf32>, i32 -> vector<1x512xf32>
    %109 = vector.extract_strided_slice %0 {offsets = [1, 0], sizes = [1, 512], strides = [1, 1]} : vector<9x512xf32> to vector<1x512xf32>
    %110 = arith.mulf %108, %109 : vector<1x512xf32>
    %111 = arith.addf %106, %110 : vector<1x512xf32>
    %112 = vector.extract_strided_slice %100 {offsets = [2, 0], sizes = [1, 512], strides = [1, 1]} : vector<9x512xf32> to vector<1x512xf32>
    %c15_i32_36 = arith.constant 15 : i32
    %113 = tpu.dynamic_rotate %112 by %c15_i32_36 dim 1 : vector<1x512xf32>, i32 -> vector<1x512xf32>
    %114 = vector.extract_strided_slice %0 {offsets = [2, 0], sizes = [1, 512], strides = [1, 1]} : vector<9x512xf32> to vector<1x512xf32>
    %115 = arith.mulf %113, %114 : vector<1x512xf32>
    %116 = arith.addf %111, %115 : vector<1x512xf32>
    %117 = vector.extract_strided_slice %100 {offsets = [3, 0], sizes = [1, 512], strides = [1, 1]} : vector<9x512xf32> to vector<1x512xf32>
    %c1_i32_37 = arith.constant 1 : i32
    %118 = tpu.dynamic_rotate %117 by %c1_i32_37 dim 1 : vector<1x512xf32>, i32 -> vector<1x512xf32>
    %119 = vector.extract_strided_slice %0 {offsets = [3, 0], sizes = [1, 512], strides = [1, 1]} : vector<9x512xf32> to vector<1x512xf32>
    %120 = arith.mulf %118, %119 : vector<1x512xf32>
    %121 = arith.addf %116, %120 : vector<1x512xf32>
    %122 = vector.extract_strided_slice %100 {offsets = [5, 0], sizes = [1, 512], strides = [1, 1]} : vector<9x512xf32> to vector<1x512xf32>
    %c511_i32_38 = arith.constant 511 : i32
    %123 = tpu.dynamic_rotate %122 by %c511_i32_38 dim 1 : vector<1x512xf32>, i32 -> vector<1x512xf32>
    %124 = vector.extract_strided_slice %0 {offsets = [5, 0], sizes = [1, 512], strides = [1, 1]} : vector<9x512xf32> to vector<1x512xf32>
    %125 = arith.mulf %123, %124 : vector<1x512xf32>
    %126 = arith.addf %121, %125 : vector<1x512xf32>
    %127 = vector.extract_strided_slice %100 {offsets = [6, 0], sizes = [1, 512], strides = [1, 1]} : vector<9x512xf32> to vector<1x512xf32>
    %c497_i32_39 = arith.constant 497 : i32
    %128 = tpu.dynamic_rotate %127 by %c497_i32_39 dim 1 : vector<1x512xf32>, i32 -> vector<1x512xf32>
    %129 = vector.extract_strided_slice %0 {offsets = [6, 0], sizes = [1, 512], strides = [1, 1]} : vector<9x512xf32> to vector<1x512xf32>
    %130 = arith.mulf %128, %129 : vector<1x512xf32>
    %131 = arith.addf %126, %130 : vector<1x512xf32>
    %132 = vector.extract_strided_slice %100 {offsets = [7, 0], sizes = [1, 512], strides = [1, 1]} : vector<9x512xf32> to vector<1x512xf32>
    %c496_i32_40 = arith.constant 496 : i32
    %133 = tpu.dynamic_rotate %132 by %c496_i32_40 dim 1 : vector<1x512xf32>, i32 -> vector<1x512xf32>
    %134 = vector.extract_strided_slice %0 {offsets = [7, 0], sizes = [1, 512], strides = [1, 1]} : vector<9x512xf32> to vector<1x512xf32>
    %135 = arith.mulf %133, %134 : vector<1x512xf32>
    %136 = arith.addf %131, %135 : vector<1x512xf32>
    %137 = vector.extract_strided_slice %100 {offsets = [8, 0], sizes = [1, 512], strides = [1, 1]} : vector<9x512xf32> to vector<1x512xf32>
    %c495_i32_41 = arith.constant 495 : i32
    %138 = tpu.dynamic_rotate %137 by %c495_i32_41 dim 1 : vector<1x512xf32>, i32 -> vector<1x512xf32>
    %139 = vector.extract_strided_slice %0 {offsets = [8, 0], sizes = [1, 512], strides = [1, 1]} : vector<9x512xf32> to vector<1x512xf32>
    %140 = arith.mulf %138, %139 : vector<1x512xf32>
    %141 = arith.addf %136, %140 : vector<1x512xf32>
    %c0_42 = arith.constant 0 : index
    %c0_43 = arith.constant 0 : index
    %142 = vector.load %arg8[%c0_42, %c0_43] : memref<1x1xf32, #tpu.memory_space<vmem>>, vector<1x1xf32>
    %143 = vector.broadcast %142 : vector<1x1xf32> to vector<1x512xf32>
    %144 = arith.addf %141, %143 : vector<1x512xf32>
    %145 = vector.extract_strided_slice %144 {offsets = [0, 0], sizes = [1, 256], strides = [1, 1]} : vector<1x512xf32> to vector<1x256xf32>
    %146 = vector.shape_cast %145 : vector<1x256xf32> to vector<1x256xf32>
    %147 = vector.broadcast %146 : vector<1x256xf32> to vector<4x256xf32>
    %148 = vector.extract_strided_slice %144 {offsets = [0, 256], sizes = [1, 256], strides = [1, 1]} : vector<1x512xf32> to vector<1x256xf32>
    %149 = vector.shape_cast %148 : vector<1x256xf32> to vector<1x256xf32>
    %150 = vector.broadcast %149 : vector<1x256xf32> to vector<4x256xf32>
    %151 = tpu.concatenate %147, %150 in 0 : vector<4x256xf32>, vector<4x256xf32> -> vector<8x256xf32>
    %c0_44 = arith.constant 0 : index
    %c0_45 = arith.constant 0 : index
    %152 = vector.load %arg1[%c0_44, %c0_45] : memref<8x256xf32, #tpu.memory_space<vmem>>, vector<8x256xf32>
    %153 = arith.addf %151, %152 : vector<8x256xf32>
    %c0_46 = arith.constant 0 : index
    %c0_47 = arith.constant 0 : index
    %154 = vector.load %arg9[%c0_46, %c0_47] : memref<8x256xf32, #tpu.memory_space<vmem>>, vector<8x256xf32>
    tpu.vector_store %arg9[%c0_46, %c0_47], %153 {strides = array<i32>} : memref<8x256xf32, #tpu.memory_space<vmem>>, vector<8x256xf32>,
    return
  }
}

</mosaic_0001>

<llo_original>
// kernel: tpu_custom_call.1
$region0: #{tpu_custom_call.1}
  #allocation0 [shape = 'u32[]', space=smem, size = 0x4, offset = 0x4, fixed_abs, tag = 'smem constant byte address 0x4 - core index']
  #allocation1 [shape = 'u32[72,128]{1,0:T(1,128)}', space=vmem, size = 0x9000, scoped, tag = 'internal scratch']
  #allocation2 [shape = 'f32[1,1]{1,0:T(1,128)S(1)}', space=vmem, size = 0x200, scoped, tag = 'scoped memory for tpu_custom_call.1']
  %s0 = inlined_call_operand.vmem [shape: f32[8,512], index: 0, kind: input, shape index: {}]
  %s1 = inlined_call_operand.hbm [shape: f32[8,256], index: 1, kind: input, shape index: {}]
  %s2 = inlined_call_operand.hbm [shape: f32[9,512], index: 2, kind: input, shape index: {}]
  %s3 = inlined_call_operand.hbm [shape: f32[16,72], index: 3, kind: input, shape index: {}]
  %s4 = inlined_call_operand.vmem [shape: f32[16,1], index: 4, kind: input, shape index: {}]
  %s5 = inlined_call_operand.hbm [shape: f32[3,16,48], index: 5, kind: input, shape index: {}]
  %s6 = inlined_call_operand.vmem [shape: f32[16,1], index: 6, kind: input, shape index: {}]
  %s7 = inlined_call_operand.hbm [shape: f32[9,16], index: 7, kind: input, shape index: {}]
  %s8 = inlined_call_operand.<no memory space> [shape: f32[1,1], index: 8, kind: input, shape index: {}]
  %s9 = inlined_call_operand.hbm [shape: f32[8,256], index: 9, kind: output, shape index: {}]
  %s10 = sld [smem:[#allocation0]]
  $region66: #{tpu_custom_call.1} parent=0
    _
  %s12 = ssub.s32 1, %s10
  %s13 = scalar_select 0, %s12, %s10
  %v14 = vstv %s8
  %15 = vst [vmem:[#allocation2] sm:$0x1] %v14
  $region1: #{tpu_custom_call.1} parent=0
    #allocation3 [shape = 'u8[8192]{0}', space=vmem, size = 0x2000, scoped, tag = 'input window, operand 1, single buffered']
    #allocation4 [shape = 's32[1]{0}', space=sflag, size = 0x4, scoped, tag = 'scoped memory for tpu_custom_call.1']
    #allocation5 [shape = 's32[1]{0}', space=sflag, size = 0x4, scoped, tag = 'scoped memory for tpu_custom_call.1']
    #allocation6 [shape = 'u8[32768]{0}', space=vmem, size = 0x8000, scoped, tag = 'input window, operand 2, single buffered']
    #allocation7 [shape = 's32[1]{0}', space=sflag, size = 0x4, scoped, tag = 'scoped memory for tpu_custom_call.1']
    #allocation8 [shape = 'u8[8192]{0}', space=vmem, size = 0x2000, scoped, tag = 'input window, operand 3, single buffered']
    #allocation9 [shape = 'u8[24576]{0}', space=vmem, size = 0x6000, scoped, tag = 'input window, operand 5, single buffered']
    #allocation10 [shape = 's32[1]{0}', space=sflag, size = 0x4, scoped, tag = 'scoped memory for tpu_custom_call.1']
    #allocation11 [shape = 'u8[8192]{0}', space=vmem, size = 0x2000, scoped, tag = 'input window, operand 7, single buffered']
    #allocation12 [shape = 'u8[8192]{0}', space=vmem, size = 0x2000, scoped, tag = 'output window, operand 0, single buffered']
    %16 = vsyncpa [#allocation4], 0
    %17 = vsyncpa [#allocation7], 0
    %18 = vsyncpa [#allocation10], 0
    %19 = vsyncpa [#allocation5], 0
    // Predicated region
    $region2: #{tpu_custom_call.1} parent=1 // pred_check
      _
    $region3: #{tpu_custom_call.1} parent=1 // pred_check_branch
      %21 = sbr.rel (0) target = $region5
    $region4: #{tpu_custom_call.1} parent=1 // pred_region
      _
    $region5: #{tpu_custom_call.1} parent=1 // pred_fallthru
      _
    // Predicated region
    $region6: #{tpu_custom_call.1} parent=1 // pred_check
      _
    $region7: #{tpu_custom_call.1} parent=1 // pred_check_branch
      %23 = sbr.rel (0) target = $region9
    $region8: #{tpu_custom_call.1} parent=1 // pred_region
      %25 = vsyncadd [#allocation4], 0
      %s27 = sshll.u32 %s1, 4
      %s28 = int_to_ptr.hbm [resolvable:$true] %s27
      %s29 = sshll.u32 [#allocation3], 4
      %s30 = int_to_ptr.vmem [resolvable:$true] %s29
      %32 = dma.hbm_to_vmem [thread:$0]  %s28, 256, %s30, [#allocation4]
    $region9: #{tpu_custom_call.1} parent=1 // pred_fallthru
      _
    // Predicated region
    $region10: #{tpu_custom_call.1} parent=1 // pred_check
      _
    $region11: #{tpu_custom_call.1} parent=1 // pred_check_branch
      %34 = sbr.rel (0) target = $region13
    $region12: #{tpu_custom_call.1} parent=1 // pred_region
      %36 = vsyncadd [#allocation7], 0
      %s37 = sshll.u32 %s2, 4
      %s38 = int_to_ptr.hbm [resolvable:$true] %s37
      %s39 = sshll.u32 [#allocation6], 4
      %s40 = int_to_ptr.vmem [resolvable:$true] %s39
      %45 = dma.hbm_to_vmem [thread:$0]  %s38, 1024, %s40, [#allocation7], 512, 512, 32
    $region13: #{tpu_custom_call.1} parent=1 // pred_fallthru
      _
    // Predicated region
    $region14: #{tpu_custom_call.1} parent=1 // pred_check
      _
    $region15: #{tpu_custom_call.1} parent=1 // pred_check_branch
      %47 = sbr.rel (0) target = $region17
    $region16: #{tpu_custom_call.1} parent=1 // pred_region
      %49 = vsyncadd [#allocation7], 0
      %s50 = sshll.u32 %s3, 4
      %s51 = int_to_ptr.hbm [resolvable:$true] %s50
      %s52 = sshll.u32 [#allocation8], 4
      %s53 = int_to_ptr.vmem [resolvable:$true] %s52
      %58 = dma.hbm_to_vmem [thread:$0]  %s51, 256, %s53, [#allocation7], 128, 128, 8
    $region17: #{tpu_custom_call.1} parent=1 // pred_fallthru
      _
    // Predicated region
    $region18: #{tpu_custom_call.1} parent=1 // pred_check
      _
    $region19: #{tpu_custom_call.1} parent=1 // pred_check_branch
      %60 = sbr.rel (0) target = $region21
    $region20: #{tpu_custom_call.1} parent=1 // pred_region
      _
    $region21: #{tpu_custom_call.1} parent=1 // pred_fallthru
      _
    // Predicated region
    $region22: #{tpu_custom_call.1} parent=1 // pred_check
      _
    $region23: #{tpu_custom_call.1} parent=1 // pred_check_branch
      %62 = sbr.rel (0) target = $region25
    $region24: #{tpu_custom_call.1} parent=1 // pred_region
      %64 = vsyncadd [#allocation10], 0
      %s65 = sshll.u32 %s5, 4
      %s66 = int_to_ptr.hbm [resolvable:$true] %s65
      %s67 = sshll.u32 [#allocation9], 4
      %s68 = int_to_ptr.vmem [resolvable:$true] %s67
      %73 = dma.hbm_to_vmem [thread:$0]  %s66, 768, %s68, [#allocation10], 128, 128, 8
    $region25: #{tpu_custom_call.1} parent=1 // pred_fallthru
      _
    // Predicated region
    $region26: #{tpu_custom_call.1} parent=1 // pred_check
      _
    $region27: #{tpu_custom_call.1} parent=1 // pred_check_branch
      %75 = sbr.rel (0) target = $region29
    $region28: #{tpu_custom_call.1} parent=1 // pred_region
      _
    $region29: #{tpu_custom_call.1} parent=1 // pred_fallthru
      _
    // Predicated region
    $region30: #{tpu_custom_call.1} parent=1 // pred_check
      _
    $region31: #{tpu_custom_call.1} parent=1 // pred_check_branch
      %77 = sbr.rel (0) target = $region33
    $region32: #{tpu_custom_call.1} parent=1 // pred_region
      %79 = vsyncadd [#allocation10], 0
      %s80 = sshll.u32 %s7, 4
      %s81 = int_to_ptr.hbm [resolvable:$true] %s80
      %s82 = sshll.u32 [#allocation11], 4
      %s83 = int_to_ptr.vmem [resolvable:$true] %s82
      %88 = dma.hbm_to_vmem [thread:$0]  %s81, 256, %s83, [#allocation10], 128, 128, 8
    $region33: #{tpu_custom_call.1} parent=1 // pred_fallthru
      _
    // Predicated region
    $region34: #{tpu_custom_call.1} parent=1 // pred_check
      _
    $region35: #{tpu_custom_call.1} parent=1 // pred_check_branch
      %90 = sbr.rel (0) target = $region37
    $region36: #{tpu_custom_call.1} parent=1 // pred_region
      _
    $region37: #{tpu_custom_call.1} parent=1 // pred_fallthru
      _
    // Predicated region
    $region38: #{tpu_custom_call.1} parent=1 // pred_check
      _
    $region39: #{tpu_custom_call.1} parent=1 // pred_check_branch
      %92 = sbr.rel (0) target = $region41
    $region40: #{tpu_custom_call.1} parent=1 // pred_region
      %94 = dma.done [#allocation4], 256
    $region41: #{tpu_custom_call.1} parent=1 // pred_fallthru
      _
    // Predicated region
    $region42: #{tpu_custom_call.1} parent=1 // pred_check
      _
    $region43: #{tpu_custom_call.1} parent=1 // pred_check_branch
      %96 = sbr.rel (0) target = $region45
    $region44: #{tpu_custom_call.1} parent=1 // pred_region
      %98 = dma.done [#allocation7], 1024
    $region45: #{tpu_custom_call.1} parent=1 // pred_fallthru
      _
    // Predicated region
    $region46: #{tpu_custom_call.1} parent=1 // pred_check
      _
    $region47: #{tpu_custom_call.1} parent=1 // pred_check_branch
      %100 = sbr.rel (0) target = $region49
    $region48: #{tpu_custom_call.1} parent=1 // pred_region
      %102 = dma.done [#allocation7], 256
    $region49: #{tpu_custom_call.1} parent=1 // pred_fallthru
      _
    // Predicated region
    $region50: #{tpu_custom_call.1} parent=1 // pred_check
      _
    $region51: #{tpu_custom_call.1} parent=1 // pred_check_branch
      %104 = sbr.rel (0) target = $region53
    $region52: #{tpu_custom_call.1} parent=1 // pred_region
      %106 = dma.done [#allocation10], 768
    $region53: #{tpu_custom_call.1} parent=1 // pred_fallthru
      _
    // Predicated region
    $region54: #{tpu_custom_call.1} parent=1 // pred_check
      _
    $region55: #{tpu_custom_call.1} parent=1 // pred_check_branch
      %108 = sbr.rel (0) target = $region57
    $region56: #{tpu_custom_call.1} parent=1 // pred_region
      %110 = dma.done [#allocation10], 256
    $region57: #{tpu_custom_call.1} parent=1 // pred_fallthru
      _
    %v111 = vld [vmem:[#allocation6] sm:$0xff]
    %v112 = vld [vmem:[#allocation6 + $0x8] sm:$0xff]
    %v113 = vld [vmem:[#allocation6 + $0x10] sm:$0xff]
    %v114 = vld [vmem:[#allocation6 + $0x18] sm:$0xff]
    %v115 = vld [vmem:[#allocation6 + $0x20] sm:$0x1]
    %v116 = vld [vmem:[#allocation6 + $0x28] sm:$0x1]
    %v117 = vld [vmem:[#allocation6 + $0x30] sm:$0x1]
    %v118 = vld [vmem:[#allocation6 + $0x38] sm:$0x1]
    %v119 = vld [vmem:[%s0] sm:$0xff]
    %v120 = vld [vmem:[%s0 + $0x8] sm:$0xff]
    %v121 = vld [vmem:[%s0 + $0x10] sm:$0xff]
    %v122 = vld [vmem:[%s0 + $0x18] sm:$0xff]
    %123 = vrot.lane.b32.xlu0 %v119, 17
    %v124 = vpop.permute.xlu0 %123
    %125 = vrot.lane.b32.xlu0 %v120, 17
    %v126 = vpop.permute.xlu0 %125
    %127 = vrot.lane.b32.xlu0 %v121, 17
    %v128 = vpop.permute.xlu0 %127
    %129 = vrot.lane.b32.xlu0 %v122, 17
    %v130 = vpop.permute.xlu0 %129
    %v131 = vlaneseq
    %v132 = vand.u32 %v131, 127
    %vm133 = vcmp.lt.s32.totalorder %v132, 17
    %v134 = vsel %vm133, %v128, %v130
    %v135 = vsel %vm133, %v126, %v128
    %v136 = vsel %vm133, %v124, %v126
    %v137 = vsel %vm133, %v130, %v124
    %v138 = vperm.slane %v111, 0
    %v139 = vperm.slane %v112, 0
    %v140 = vperm.slane %v113, 0
    %v141 = vperm.slane %v114, 0
    %v142 = vmul.f32 %v137, %v138
    %v143 = vmul.f32 %v136, %v139
    %v144 = vmul.f32 %v135, %v140
    %v145 = vmul.f32 %v134, %v141
    %146 = vrot.lane.b32.xlu0 %v119, 16
    %v147 = vpop.permute.xlu0 %146
    %148 = vrot.lane.b32.xlu0 %v120, 16
    %v149 = vpop.permute.xlu0 %148
    %150 = vrot.lane.b32.xlu0 %v121, 16
    %v151 = vpop.permute.xlu0 %150
    %152 = vrot.lane.b32.xlu0 %v122, 16
    %v153 = vpop.permute.xlu0 %152
    %vm154 = vcmp.lt.s32.totalorder %v132, 16
    %v155 = vsel %vm154, %v151, %v153
    %v156 = vsel %vm154, %v149, %v151
    %v157 = vsel %vm154, %v147, %v149
    %v158 = vsel %vm154, %v153, %v147
    %v159 = vperm.slane %v111, 1
    %v160 = vperm.slane %v112, 1
    %v161 = vperm.slane %v113, 1
    %v162 = vperm.slane %v114, 1
    %v163 = vmul.f32 %v158, %v159
    %v164 = vmul.f32 %v157, %v160
    %v165 = vmul.f32 %v156, %v161
    %v166 = vmul.f32 %v155, %v162
    %167 = vrot.lane.b32.xlu0 %v119, 15
    %v168 = vpop.permute.xlu0 %167
    %169 = vrot.lane.b32.xlu0 %v120, 15
    %v170 = vpop.permute.xlu0 %169
    %171 = vrot.lane.b32.xlu0 %v121, 15
    %v172 = vpop.permute.xlu0 %171
    %173 = vrot.lane.b32.xlu0 %v122, 15
    %v174 = vpop.permute.xlu0 %173
    %vm175 = vcmp.lt.s32.totalorder %v132, 15
    %v176 = vsel %vm175, %v172, %v174
    %v177 = vsel %vm175, %v170, %v172
    %v178 = vsel %vm175, %v168, %v170
    %v179 = vsel %vm175, %v174, %v168
    %v180 = vperm.slane %v111, 2
    %v181 = vperm.slane %v112, 2
    %v182 = vperm.slane %v113, 2
    %v183 = vperm.slane %v114, 2
    %v184 = vmul.f32 %v179, %v180
    %v185 = vmul.f32 %v178, %v181
    %v186 = vmul.f32 %v177, %v182
    %v187 = vmul.f32 %v176, %v183
    %188 = vrot.lane.b32.xlu0 %v119, 1
    %v189 = vpop.permute.xlu0 %188
    %190 = vrot.lane.b32.xlu0 %v120, 1
    %v191 = vpop.permute.xlu0 %190
    %192 = vrot.lane.b32.xlu0 %v121, 1
    %v193 = vpop.permute.xlu0 %192
    %194 = vrot.lane.b32.xlu0 %v122, 1
    %v195 = vpop.permute.xlu0 %194
    %vm196 = vcmp.lt.s32.totalorder %v132, 1
    %v197 = vsel %vm196, %v193, %v195
    %v198 = vsel %vm196, %v191, %v193
    %v199 = vsel %vm196, %v189, %v191
    %v200 = vsel %vm196, %v195, %v189
    %v201 = vperm.slane %v111, 3
    %v202 = vperm.slane %v112, 3
    %v203 = vperm.slane %v113, 3
    %v204 = vperm.slane %v114, 3
    %v205 = vmul.f32 %v200, %v201
    %v206 = vmul.f32 %v199, %v202
    %v207 = vmul.f32 %v198, %v203
    %v208 = vmul.f32 %v197, %v204
    %209 = vrot.lane.b32.xlu0 %v119, 127
    %v210 = vpop.permute.xlu0 %209
    %211 = vrot.lane.b32.xlu0 %v120, 127
    %v212 = vpop.permute.xlu0 %211
    %213 = vrot.lane.b32.xlu0 %v121, 127
    %v214 = vpop.permute.xlu0 %213
    %215 = vrot.lane.b32.xlu0 %v122, 127
    %v216 = vpop.permute.xlu0 %215
    %vm217 = vcmp.lt.s32.totalorder %v132, 127
    %v218 = vsel %vm217, %v214, %v216
    %v219 = vsel %vm217, %v212, %v214
    %v220 = vsel %vm217, %v210, %v212
    %v221 = vsel %vm217, %v216, %v210
    %v222 = vperm.slane %v111, 5
    %v223 = vperm.slane %v112, 5
    %v224 = vperm.slane %v113, 5
    %v225 = vperm.slane %v114, 5
    %v226 = vmul.f32 %v220, %v222
    %v227 = vmul.f32 %v219, %v223
    %v228 = vmul.f32 %v218, %v224
    %v229 = vmul.f32 %v221, %v225
    %230 = vrot.lane.b32.xlu0 %v119, 113
    %v231 = vpop.permute.xlu0 %230
    %232 = vrot.lane.b32.xlu0 %v120, 113
    %v233 = vpop.permute.xlu0 %232
    %234 = vrot.lane.b32.xlu0 %v121, 113
    %v235 = vpop.permute.xlu0 %234
    %236 = vrot.lane.b32.xlu0 %v122, 113
    %v237 = vpop.permute.xlu0 %236
    %vm238 = vcmp.lt.s32.totalorder %v132, 113
    %v239 = vsel %vm238, %v235, %v237
    %v240 = vsel %vm238, %v233, %v235
    %v241 = vsel %vm238, %v231, %v233
    %v242 = vsel %vm238, %v237, %v231
    %v243 = vperm.slane %v111, 6
    %v244 = vperm.slane %v112, 6
    %v245 = vperm.slane %v113, 6
    %v246 = vperm.slane %v114, 6
    %v247 = vmul.f32 %v241, %v243
    %v248 = vmul.f32 %v240, %v244
    %v249 = vmul.f32 %v239, %v245
    %v250 = vmul.f32 %v242, %v246
    %251 = vrot.lane.b32.xlu0 %v119, 112
    %v252 = vpop.permute.xlu0 %251
    %253 = vrot.lane.b32.xlu0 %v120, 112
    %v254 = vpop.permute.xlu0 %253
    %255 = vrot.lane.b32.xlu0 %v121, 112
    %v256 = vpop.permute.xlu0 %255
    %257 = vrot.lane.b32.xlu0 %v122, 112
    %v258 = vpop.permute.xlu0 %257
    %vm259 = vcmp.lt.s32.totalorder %v132, 112
    %v260 = vsel %vm259, %v256, %v258
    %v261 = vsel %vm259, %v254, %v256
    %v262 = vsel %vm259, %v252, %v254
    %v263 = vsel %vm259, %v258, %v252
    %v264 = vperm.slane %v111, 7
    %v265 = vperm.slane %v112, 7
    %v266 = vperm.slane %v113, 7
    %v267 = vperm.slane %v114, 7
    %v268 = vmul.f32 %v262, %v264
    %v269 = vmul.f32 %v261, %v265
    %v270 = vmul.f32 %v260, %v266
    %v271 = vmul.f32 %v263, %v267
    %272 = vrot.lane.b32.xlu0 %v119, 111
    %v273 = vpop.permute.xlu0 %272
    %274 = vrot.lane.b32.xlu0 %v120, 111
    %v275 = vpop.permute.xlu0 %274
    %276 = vrot.lane.b32.xlu0 %v121, 111
    %v277 = vpop.permute.xlu0 %276
    %278 = vrot.lane.b32.xlu0 %v122, 111
    %v279 = vpop.permute.xlu0 %278
    %vm280 = vcmp.lt.s32.totalorder %v132, 111
    %v281 = vsel %vm280, %v277, %v279
    %v282 = vsel %vm280, %v275, %v277
    %v283 = vsel %vm280, %v273, %v275
    %v284 = vsel %vm280, %v279, %v273
    %v285 = vperm.slane %v115, 0
    %v286 = vperm.slane %v116, 0
    %v287 = vperm.slane %v117, 0
    %v288 = vperm.slane %v118, 0
    %v289 = vmul.f32 %v283, %v285
    %v290 = vmul.f32 %v282, %v286
    %v291 = vmul.f32 %v281, %v287
    %v292 = vmul.f32 %v284, %v288
    %v293 = vld [vmem:[#allocation8] sm:$0xff]
    %v294 = vld [vmem:[#allocation8 + $0x8] sm:$0xff]
    %v295 = vld [vmem:[%s4] sm:$0xff]
    %v296 = vld [vmem:[%s4 + $0x8] sm:$0xff]
    %298 = vset.pattern.permute.xlu0 0
    %299 = vperm.xlu0 %298, %v295
    %v300 = vpop.permute.xlu0 %299
    %303 = vset.pattern.permute.xlu0 0
    %304 = vperm.xlu0 %303, %v296
    %v305 = vpop.permute.xlu0 %304
    %vm307 = vcmask 588800
    %v309 = vsel %vm307, %v293, 0
    %v312 = vsel %vm307, %v294, 0
    %314 = vmatpush.msra.mxu0 0.0
    %315 = vmatpush.msra.mxu0 0.0
    %316 = vmatpush.msra.mxu0 0.0
    %317 = vmatpush.msra.mxu0 0.0
    %318 = vmatpush.msra.mxu0 0.0
    %319 = vmatpush.msra.mxu0 0.0
    %320 = vmatpush.msra.mxu0 0.0
    %321 = vmatpush.msra.mxu0 %v289
    %322 = vmatpush.msra.mxu0 %v268
    %323 = vmatpush.msra.mxu0 %v247
    %324 = vmatpush.msra.mxu0 %v226
    %325 = vmatpush.msra.mxu0 %v119
    %326 = vmatpush.msra.mxu0 %v205
    %327 = vmatpush.msra.mxu0 %v184
    %328 = vmatpush.msra.mxu0 %v163
    %329 = vmatpush.msra.mxu0 %v142
    %330 = vmatmul.f32.gmra.mxu0 %v309
    %v331 = vpop.f32.mrf.mxu0
    %v332 = vadd.f32 %v300, %v331
    %333 = vmatmul.f32.gmra.mxu0 %v312
    %v334 = vpop.f32.mrf.mxu0
    %v335 = vadd.f32 %v305, %v334
    %336 = vdwg.mxu0
    %337 = vmatpush.msra.mxu0 0.0
    %338 = vmatpush.msra.mxu0 0.0
    %339 = vmatpush.msra.mxu0 0.0
    %340 = vmatpush.msra.mxu0 0.0
    %341 = vmatpush.msra.mxu0 0.0
    %342 = vmatpush.msra.mxu0 0.0
    %343 = vmatpush.msra.mxu0 0.0
    %344 = vmatpush.msra.mxu0 %v290
    %345 = vmatpush.msra.mxu0 %v269
    %346 = vmatpush.msra.mxu0 %v248
    %347 = vmatpush.msra.mxu0 %v227
    %348 = vmatpush.msra.mxu0 %v120
    %349 = vmatpush.msra.mxu0 %v206
    %350 = vmatpush.msra.mxu0 %v185
    %351 = vmatpush.msra.mxu0 %v164
    %352 = vmatpush.msra.mxu0 %v143
    %353 = vmatmul.f32.gmra.mxu0 %v309
    %v354 = vpop.f32.mrf.mxu0
    %v355 = vadd.f32 %v300, %v354
    %356 = vmatmul.f32.gmra.mxu0 %v312
    %v357 = vpop.f32.mrf.mxu0
    %v358 = vadd.f32 %v305, %v357
    %359 = vdwg.mxu0
    %360 = vmatpush.msra.mxu0 0.0
    %361 = vmatpush.msra.mxu0 0.0
    %362 = vmatpush.msra.mxu0 0.0
    %363 = vmatpush.msra.mxu0 0.0
    %364 = vmatpush.msra.mxu0 0.0
    %365 = vmatpush.msra.mxu0 0.0
    %366 = vmatpush.msra.mxu0 0.0
    %367 = vmatpush.msra.mxu0 %v291
    %368 = vmatpush.msra.mxu0 %v270
    %369 = vmatpush.msra.mxu0 %v249
    %370 = vmatpush.msra.mxu0 %v228
    %371 = vmatpush.msra.mxu0 %v121
    %372 = vmatpush.msra.mxu0 %v207
    %373 = vmatpush.msra.mxu0 %v186
    %374 = vmatpush.msra.mxu0 %v165
    %375 = vmatpush.msra.mxu0 %v144
    %376 = vmatmul.f32.gmra.mxu0 %v309
    %v377 = vpop.f32.mrf.mxu0
    %v378 = vadd.f32 %v300, %v377
    %379 = vmatmul.f32.gmra.mxu0 %v312
    %v380 = vpop.f32.mrf.mxu0
    %v381 = vadd.f32 %v305, %v380
    %382 = vdwg.mxu0
    %383 = vmatpush.msra.mxu0 0.0
    %384 = vmatpush.msra.mxu0 0.0
    %385 = vmatpush.msra.mxu0 0.0
    %386 = vmatpush.msra.mxu0 0.0
    %387 = vmatpush.msra.mxu0 0.0
    %388 = vmatpush.msra.mxu0 0.0
    %389 = vmatpush.msra.mxu0 0.0
    %390 = vmatpush.msra.mxu0 %v292
    %391 = vmatpush.msra.mxu0 %v271
    %392 = vmatpush.msra.mxu0 %v250
    %393 = vmatpush.msra.mxu0 %v229
    %394 = vmatpush.msra.mxu0 %v122
    %395 = vmatpush.msra.mxu0 %v208
    %396 = vmatpush.msra.mxu0 %v187
    %397 = vmatpush.msra.mxu0 %v166
    %398 = vmatpush.msra.mxu0 %v145
    %399 = vmatmul.f32.gmra.mxu0 %v309
    %v400 = vpop.f32.mrf.mxu0
    %v401 = vadd.f32 %v300, %v400
    %402 = vmatmul.f32.gmra.mxu0 %v312
    %v403 = vpop.f32.mrf.mxu0
    %v404 = vadd.f32 %v305, %v403
    %405 = vdwg.mxu0
    %vm406 = vcmp.gt.f32.partialorder %v332, 0.0
    %vm407 = vcmp.gt.f32.partialorder %v355, 0.0
    %vm408 = vcmp.gt.f32.partialorder %v378, 0.0
    %vm409 = vcmp.gt.f32.partialorder %v401, 0.0
    %vm410 = vcmp.gt.f32.partialorder %v335, 0.0
    %vm411 = vcmp.gt.f32.partialorder %v358, 0.0
    %vm412 = vcmp.gt.f32.partialorder %v381, 0.0
    %vm413 = vcmp.gt.f32.partialorder %v404, 0.0
    %v414 = vmul.f32 %v332, 0.2
    %v415 = vmul.f32 %v355, 0.2
    %v416 = vmul.f32 %v378, 0.2
    %v417 = vmul.f32 %v401, 0.2
    %v418 = vmul.f32 %v335, 0.2
    %v419 = vmul.f32 %v358, 0.2
    %v420 = vmul.f32 %v381, 0.2
    %v421 = vmul.f32 %v404, 0.2
    %v422 = vsel %vm406, %v332, %v414
    %v423 = vsel %vm407, %v355, %v415
    %v424 = vsel %vm408, %v378, %v416
    %v425 = vsel %vm409, %v401, %v417
    %v426 = vsel %vm410, %v335, %v418
    %v427 = vsel %vm411, %v358, %v419
    %v428 = vsel %vm412, %v381, %v420
    %v429 = vsel %vm413, %v404, %v421
    %430 = vrot.lane.b32.xlu0 %v422, 17
    %v431 = vpop.permute.xlu0 %430
    %432 = vrot.lane.b32.xlu0 %v426, 17
    %v433 = vpop.permute.xlu0 %432
    %434 = vrot.lane.b32.xlu0 %v423, 17
    %v435 = vpop.permute.xlu0 %434
    %436 = vrot.lane.b32.xlu0 %v427, 17
    %v437 = vpop.permute.xlu0 %436
    %438 = vrot.lane.b32.xlu0 %v424, 17
    %v439 = vpop.permute.xlu0 %438
    %440 = vrot.lane.b32.xlu0 %v428, 17
    %v441 = vpop.permute.xlu0 %440
    %442 = vrot.lane.b32.xlu0 %v425, 17
    %v443 = vpop.permute.xlu0 %442
    %444 = vrot.lane.b32.xlu0 %v429, 17
    %v445 = vpop.permute.xlu0 %444
    %v446 = vsel %vm133, %v439, %v443
    %v447 = vsel %vm133, %v441, %v445
    %v448 = vsel %vm133, %v435, %v439
    %v449 = vsel %vm133, %v437, %v441
    %v450 = vsel %vm133, %v431, %v435
    %v451 = vsel %vm133, %v433, %v437
    %v452 = vsel %vm133, %v443, %v431
    %v453 = vsel %vm133, %v445, %v433
    %v454 = vmul.f32 %v452, %v138
    %v455 = vmul.f32 %v450, %v139
    %v456 = vmul.f32 %v448, %v140
    %v457 = vmul.f32 %v446, %v141
    %v458 = vmul.f32 %v453, %v138
    %v459 = vmul.f32 %v451, %v139
    %v460 = vmul.f32 %v449, %v140
    %v461 = vmul.f32 %v447, %v141
    %462 = vrot.lane.b32.xlu0 %v422, 16
    %v463 = vpop.permute.xlu0 %462
    %464 = vrot.lane.b32.xlu0 %v426, 16
    %v465 = vpop.permute.xlu0 %464
    %466 = vrot.lane.b32.xlu0 %v423, 16
    %v467 = vpop.permute.xlu0 %466
    %468 = vrot.lane.b32.xlu0 %v427, 16
    %v469 = vpop.permute.xlu0 %468
    %470 = vrot.lane.b32.xlu0 %v424, 16
    %v471 = vpop.permute.xlu0 %470
    %472 = vrot.lane.b32.xlu0 %v428, 16
    %v473 = vpop.permute.xlu0 %472
    %474 = vrot.lane.b32.xlu0 %v425, 16
    %v475 = vpop.permute.xlu0 %474
    %476 = vrot.lane.b32.xlu0 %v429, 16
    %v477 = vpop.permute.xlu0 %476
    %v478 = vsel %vm154, %v471, %v475
    %v479 = vsel %vm154, %v473, %v477
    %v480 = vsel %vm154, %v467, %v471
    %v481 = vsel %vm154, %v469, %v473
    %v482 = vsel %vm154, %v463, %v467
    %v483 = vsel %vm154, %v465, %v469
    %v484 = vsel %vm154, %v475, %v463
    %v485 = vsel %vm154, %v477, %v465
    %v486 = vmul.f32 %v484, %v159
    %v487 = vmul.f32 %v482, %v160
    %v488 = vmul.f32 %v480, %v161
    %v489 = vmul.f32 %v478, %v162
    %v490 = vmul.f32 %v485, %v159
    %v491 = vmul.f32 %v483, %v160
    %v492 = vmul.f32 %v481, %v161
    %v493 = vmul.f32 %v479, %v162
    %494 = vrot.lane.b32.xlu0 %v422, 15
    %v495 = vpop.permute.xlu0 %494
    %496 = vrot.lane.b32.xlu0 %v426, 15
    %v497 = vpop.permute.xlu0 %496
    %498 = vrot.lane.b32.xlu0 %v423, 15
    %v499 = vpop.permute.xlu0 %498
    %500 = vrot.lane.b32.xlu0 %v427, 15
    %v501 = vpop.permute.xlu0 %500
    %502 = vrot.lane.b32.xlu0 %v424, 15
    %v503 = vpop.permute.xlu0 %502
    %504 = vrot.lane.b32.xlu0 %v428, 15
    %v505 = vpop.permute.xlu0 %504
    %506 = vrot.lane.b32.xlu0 %v425, 15
    %v507 = vpop.permute.xlu0 %506
    %508 = vrot.lane.b32.xlu0 %v429, 15
    %v509 = vpop.permute.xlu0 %508
    %v510 = vsel %vm175, %v503, %v507
    %v511 = vsel %vm175, %v505, %v509
    %v512 = vsel %vm175, %v499, %v503
    %v513 = vsel %vm175, %v501, %v505
    %v514 = vsel %vm175, %v495, %v499
    %v515 = vsel %vm175, %v497, %v501
    %v516 = vsel %vm175, %v507, %v495
    %v517 = vsel %vm175, %v509, %v497
    %v518 = vmul.f32 %v516, %v180
    %v519 = vmul.f32 %v514, %v181
    %v520 = vmul.f32 %v512, %v182
    %v521 = vmul.f32 %v510, %v183
    %v522 = vmul.f32 %v517, %v180
    %v523 = vmul.f32 %v515, %v181
    %v524 = vmul.f32 %v513, %v182
    %v525 = vmul.f32 %v511, %v183
    %v526 = vld [vmem:[#allocation9] sm:$0xff]
    %v527 = vld [vmem:[#allocation9 + $0x8] sm:$0xff]
    %528 = vrot.lane.b32.xlu0 %v422, 1
    %v529 = vpop.permute.xlu0 %528
    %530 = vrot.lane.b32.xlu0 %v426, 1
    %v531 = vpop.permute.xlu0 %530
    %532 = vrot.lane.b32.xlu0 %v423, 1
    %v533 = vpop.permute.xlu0 %532
    %534 = vrot.lane.b32.xlu0 %v427, 1
    %v535 = vpop.permute.xlu0 %534
    %536 = vrot.lane.b32.xlu0 %v424, 1
    %v537 = vpop.permute.xlu0 %536
    %538 = vrot.lane.b32.xlu0 %v428, 1
    %v539 = vpop.permute.xlu0 %538
    %540 = vrot.lane.b32.xlu0 %v425, 1
    %v541 = vpop.permute.xlu0 %540
    %542 = vrot.lane.b32.xlu0 %v429, 1
    %v543 = vpop.permute.xlu0 %542
    %v544 = vsel %vm196, %v537, %v541
    %v545 = vsel %vm196, %v539, %v543
    %v546 = vsel %vm196, %v533, %v537
    %v547 = vsel %vm196, %v535, %v539
    %v548 = vsel %vm196, %v529, %v533
    %v549 = vsel %vm196, %v531, %v535
    %v550 = vsel %vm196, %v541, %v529
    %v551 = vsel %vm196, %v543, %v531
    %v552 = vmul.f32 %v550, %v201
    %v553 = vmul.f32 %v548, %v202
    %v554 = vmul.f32 %v546, %v203
    %v555 = vmul.f32 %v544, %v204
    %v556 = vmul.f32 %v551, %v201
    %v557 = vmul.f32 %v549, %v202
    %v558 = vmul.f32 %v547, %v203
    %v559 = vmul.f32 %v545, %v204
    %560 = vrot.lane.b32.xlu0 %v422, 127
    %v561 = vpop.permute.xlu0 %560
    %562 = vrot.lane.b32.xlu0 %v426, 127
    %v563 = vpop.permute.xlu0 %562
    %564 = vrot.lane.b32.xlu0 %v423, 127
    %v565 = vpop.permute.xlu0 %564
    %566 = vrot.lane.b32.xlu0 %v427, 127
    %v567 = vpop.permute.xlu0 %566
    %568 = vrot.lane.b32.xlu0 %v424, 127
    %v569 = vpop.permute.xlu0 %568
    %570 = vrot.lane.b32.xlu0 %v428, 127
    %v571 = vpop.permute.xlu0 %570
    %572 = vrot.lane.b32.xlu0 %v425, 127
    %v573 = vpop.permute.xlu0 %572
    %574 = vrot.lane.b32.xlu0 %v429, 127
    %v575 = vpop.permute.xlu0 %574
    %v576 = vsel %vm217, %v569, %v573
    %v577 = vsel %vm217, %v571, %v575
    %v578 = vsel %vm217, %v565, %v569
    %v579 = vsel %vm217, %v567, %v571
    %v580 = vsel %vm217, %v561, %v565
    %v581 = vsel %vm217, %v563, %v567
    %v582 = vsel %vm217, %v573, %v561
    %v583 = vsel %vm217, %v575, %v563
    %v584 = vmul.f32 %v580, %v222
    %v585 = vmul.f32 %v578, %v223
    %v586 = vmul.f32 %v576, %v224
    %v587 = vmul.f32 %v582, %v225
    %v588 = vmul.f32 %v581, %v222
    %v589 = vmul.f32 %v579, %v223
    %v590 = vmul.f32 %v577, %v224
    %v591 = vmul.f32 %v583, %v225
    %s592 = scalar_lea.vmem [#allocation9], 16
    %v593 = vld [vmem:[%s592] sm:$0xff]
    %v594 = vld [vmem:[%s592 + $0x8] sm:$0xff]
    %vm595 = vcmask 392192
    %v597 = vsel %vm595, %v593, 0
    %v600 = vsel %vm595, %v594, 0
    %602 = vmatpush.msra.mxu0 0.0
    %603 = vmatpush.msra.mxu0 0.0
    %604 = vmatpush.msra.mxu0 0.0
    %605 = vmatpush.msra.mxu0 0.0
    %606 = vmatpush.msra.mxu0 0.0
    %607 = vmatpush.msra.mxu0 0.0
    %608 = vmatpush.msra.mxu0 0.0
    %609 = vmatpush.msra.mxu0 0.0
    %610 = vmatpush.msra.mxu0 0.0
    %611 = vmatpush.msra.mxu0 0.0
    %612 = vmatpush.msra.mxu0 %v588
    %613 = vmatpush.msra.mxu0 %v584
    %614 = vmatpush.msra.mxu0 %v426
    %615 = vmatpush.msra.mxu0 %v422
    %616 = vmatpush.msra.mxu0 %v556
    %617 = vmatpush.msra.mxu0 %v552
    %618 = vmatmul.f32.gmra.mxu0 %v597
    %v619 = vpop.f32.mrf.mxu0
    %v620 = vadd.f32 0.0, %v619
    %621 = vmatmul.f32.gmra.mxu0 %v600
    %v622 = vpop.f32.mrf.mxu0
    %v623 = vadd.f32 0.0, %v622
    %624 = vdwg.mxu0
    %625 = vmatpush.msra.mxu0 0.0
    %626 = vmatpush.msra.mxu0 0.0
    %627 = vmatpush.msra.mxu0 0.0
    %628 = vmatpush.msra.mxu0 0.0
    %629 = vmatpush.msra.mxu0 0.0
    %630 = vmatpush.msra.mxu0 0.0
    %631 = vmatpush.msra.mxu0 0.0
    %632 = vmatpush.msra.mxu0 0.0
    %633 = vmatpush.msra.mxu0 0.0
    %634 = vmatpush.msra.mxu0 0.0
    %635 = vmatpush.msra.mxu0 %v589
    %636 = vmatpush.msra.mxu0 %v585
    %637 = vmatpush.msra.mxu0 %v427
    %638 = vmatpush.msra.mxu0 %v423
    %639 = vmatpush.msra.mxu0 %v557
    %640 = vmatpush.msra.mxu0 %v553
    %641 = vmatmul.f32.gmra.mxu0 %v597
    %v642 = vpop.f32.mrf.mxu0
    %v643 = vadd.f32 0.0, %v642
    %644 = vmatmul.f32.gmra.mxu0 %v600
    %v645 = vpop.f32.mrf.mxu0
    %v646 = vadd.f32 0.0, %v645
    %647 = vdwg.mxu0
    %648 = vmatpush.msra.mxu0 0.0
    %649 = vmatpush.msra.mxu0 0.0
    %650 = vmatpush.msra.mxu0 0.0
    %651 = vmatpush.msra.mxu0 0.0
    %652 = vmatpush.msra.mxu0 0.0
    %653 = vmatpush.msra.mxu0 0.0
    %654 = vmatpush.msra.mxu0 0.0
    %655 = vmatpush.msra.mxu0 0.0
    %656 = vmatpush.msra.mxu0 0.0
    %657 = vmatpush.msra.mxu0 0.0
    %658 = vmatpush.msra.mxu0 %v590
    %659 = vmatpush.msra.mxu0 %v586
    %660 = vmatpush.msra.mxu0 %v428
    %661 = vmatpush.msra.mxu0 %v424
    %662 = vmatpush.msra.mxu0 %v558
    %663 = vmatpush.msra.mxu0 %v554
    %664 = vmatmul.f32.gmra.mxu0 %v597
    %v665 = vpop.f32.mrf.mxu0
    %v666 = vadd.f32 0.0, %v665
    %667 = vmatmul.f32.gmra.mxu0 %v600
    %v668 = vpop.f32.mrf.mxu0
    %v669 = vadd.f32 0.0, %v668
    %670 = vdwg.mxu0
    %671 = vmatpush.msra.mxu0 0.0
    %672 = vmatpush.msra.mxu0 0.0
    %673 = vmatpush.msra.mxu0 0.0
    %674 = vmatpush.msra.mxu0 0.0
    %675 = vmatpush.msra.mxu0 0.0
    %676 = vmatpush.msra.mxu0 0.0
    %677 = vmatpush.msra.mxu0 0.0
    %678 = vmatpush.msra.mxu0 0.0
    %679 = vmatpush.msra.mxu0 0.0
    %680 = vmatpush.msra.mxu0 0.0
    %681 = vmatpush.msra.mxu0 %v591
    %682 = vmatpush.msra.mxu0 %v587
    %683 = vmatpush.msra.mxu0 %v429
    %684 = vmatpush.msra.mxu0 %v425
    %685 = vmatpush.msra.mxu0 %v559
    %686 = vmatpush.msra.mxu0 %v555
    %687 = vmatmul.f32.gmra.mxu0 %v597
    %v688 = vpop.f32.mrf.mxu0
    %v689 = vadd.f32 0.0, %v688
    %690 = vmatmul.f32.gmra.mxu0 %v600
    %v691 = vpop.f32.mrf.mxu0
    %v692 = vadd.f32 0.0, %v691
    %693 = vdwg.mxu0
    %v695 = vsel %vm595, %v526, 0
    %v698 = vsel %vm595, %v527, 0
    %700 = vmatpush.msra.mxu0 0.0
    %701 = vmatpush.msra.mxu0 0.0
    %702 = vmatpush.msra.mxu0 0.0
    %703 = vmatpush.msra.mxu0 0.0
    %704 = vmatpush.msra.mxu0 0.0
    %705 = vmatpush.msra.mxu0 0.0
    %706 = vmatpush.msra.mxu0 0.0
    %707 = vmatpush.msra.mxu0 0.0
    %708 = vmatpush.msra.mxu0 0.0
    %709 = vmatpush.msra.mxu0 0.0
    %710 = vmatpush.msra.mxu0 %v522
    %711 = vmatpush.msra.mxu0 %v518
    %712 = vmatpush.msra.mxu0 %v490
    %713 = vmatpush.msra.mxu0 %v486
    %714 = vmatpush.msra.mxu0 %v458
    %715 = vmatpush.msra.mxu0 %v454
    %716 = vmatmul.f32.gmra.mxu0 %v695
    %v717 = vpop.f32.mrf.mxu0
    %v718 = vadd.f32 %v620, %v717
    %719 = vmatmul.f32.gmra.mxu0 %v698
    %v720 = vpop.f32.mrf.mxu0
    %v721 = vadd.f32 %v623, %v720
    %722 = vdwg.mxu0
    %723 = vmatpush.msra.mxu0 0.0
    %724 = vmatpush.msra.mxu0 0.0
    %725 = vmatpush.msra.mxu0 0.0
    %726 = vmatpush.msra.mxu0 0.0
    %727 = vmatpush.msra.mxu0 0.0
    %728 = vmatpush.msra.mxu0 0.0
    %729 = vmatpush.msra.mxu0 0.0
    %730 = vmatpush.msra.mxu0 0.0
    %731 = vmatpush.msra.mxu0 0.0
    %732 = vmatpush.msra.mxu0 0.0
    %733 = vmatpush.msra.mxu0 %v523
    %734 = vmatpush.msra.mxu0 %v519
    %735 = vmatpush.msra.mxu0 %v491
    %736 = vmatpush.msra.mxu0 %v487
    %737 = vmatpush.msra.mxu0 %v459
    %738 = vmatpush.msra.mxu0 %v455
    %739 = vmatmul.f32.gmra.mxu0 %v695
    %v740 = vpop.f32.mrf.mxu0
    %v741 = vadd.f32 %v643, %v740
    %742 = vmatmul.f32.gmra.mxu0 %v698
    %v743 = vpop.f32.mrf.mxu0
    %v744 = vadd.f32 %v646, %v743
    %745 = vdwg.mxu0
    %746 = vmatpush.msra.mxu0 0.0
    %747 = vmatpush.msra.mxu0 0.0
    %748 = vmatpush.msra.mxu0 0.0
    %749 = vmatpush.msra.mxu0 0.0
    %750 = vmatpush.msra.mxu0 0.0
    %751 = vmatpush.msra.mxu0 0.0
    %752 = vmatpush.msra.mxu0 0.0
    %753 = vmatpush.msra.mxu0 0.0
    %754 = vmatpush.msra.mxu0 0.0
    %755 = vmatpush.msra.mxu0 0.0
    %756 = vmatpush.msra.mxu0 %v524
    %757 = vmatpush.msra.mxu0 %v520
    %758 = vmatpush.msra.mxu0 %v492
    %759 = vmatpush.msra.mxu0 %v488
    %760 = vmatpush.msra.mxu0 %v460
    %761 = vmatpush.msra.mxu0 %v456
    %762 = vmatmul.f32.gmra.mxu0 %v695
    %v763 = vpop.f32.mrf.mxu0
    %v764 = vadd.f32 %v666, %v763
    %765 = vmatmul.f32.gmra.mxu0 %v698
    %v766 = vpop.f32.mrf.mxu0
    %v767 = vadd.f32 %v669, %v766
    %768 = vdwg.mxu0
    %769 = vmatpush.msra.mxu0 0.0
    %770 = vmatpush.msra.mxu0 0.0
    %771 = vmatpush.msra.mxu0 0.0
    %772 = vmatpush.msra.mxu0 0.0
    %773 = vmatpush.msra.mxu0 0.0
    %774 = vmatpush.msra.mxu0 0.0
    %775 = vmatpush.msra.mxu0 0.0
    %776 = vmatpush.msra.mxu0 0.0
    %777 = vmatpush.msra.mxu0 0.0
    %778 = vmatpush.msra.mxu0 0.0
    %779 = vmatpush.msra.mxu0 %v525
    %780 = vmatpush.msra.mxu0 %v521
    %781 = vmatpush.msra.mxu0 %v493
    %782 = vmatpush.msra.mxu0 %v489
    %783 = vmatpush.msra.mxu0 %v461
    %784 = vmatpush.msra.mxu0 %v457
    %785 = vmatmul.f32.gmra.mxu0 %v695
    %v786 = vpop.f32.mrf.mxu0
    %v787 = vadd.f32 %v689, %v786
    %788 = vmatmul.f32.gmra.mxu0 %v698
    %v789 = vpop.f32.mrf.mxu0
    %v790 = vadd.f32 %v692, %v789
    %791 = vdwg.mxu0
    %792 = vrot.lane.b32.xlu0 %v422, 113
    %v793 = vpop.permute.xlu0 %792
    %794 = vrot.lane.b32.xlu0 %v426, 113
    %v795 = vpop.permute.xlu0 %794
    %796 = vrot.lane.b32.xlu0 %v423, 113
    %v797 = vpop.permute.xlu0 %796
    %798 = vrot.lane.b32.xlu0 %v427, 113
    %v799 = vpop.permute.xlu0 %798
    %800 = vrot.lane.b32.xlu0 %v424, 113
    %v801 = vpop.permute.xlu0 %800
    %802 = vrot.lane.b32.xlu0 %v428, 113
    %v803 = vpop.permute.xlu0 %802
    %804 = vrot.lane.b32.xlu0 %v425, 113
    %v805 = vpop.permute.xlu0 %804
    %806 = vrot.lane.b32.xlu0 %v429, 113
    %v807 = vpop.permute.xlu0 %806
    %v808 = vsel %vm238, %v801, %v805
    %v809 = vsel %vm238, %v803, %v807
    %v810 = vsel %vm238, %v797, %v801
    %v811 = vsel %vm238, %v799, %v803
    %v812 = vsel %vm238, %v793, %v797
    %v813 = vsel %vm238, %v795, %v799
    %v814 = vsel %vm238, %v805, %v793
    %v815 = vsel %vm238, %v807, %v795
    %v816 = vmul.f32 %v812, %v243
    %v817 = vmul.f32 %v810, %v244
    %v818 = vmul.f32 %v808, %v245
    %v819 = vmul.f32 %v814, %v246
    %v820 = vmul.f32 %v813, %v243
    %v821 = vmul.f32 %v811, %v244
    %v822 = vmul.f32 %v809, %v245
    %v823 = vmul.f32 %v815, %v246
    %824 = vrot.lane.b32.xlu0 %v422, 112
    %v825 = vpop.permute.xlu0 %824
    %826 = vrot.lane.b32.xlu0 %v426, 112
    %v827 = vpop.permute.xlu0 %826
    %828 = vrot.lane.b32.xlu0 %v423, 112
    %v829 = vpop.permute.xlu0 %828
    %830 = vrot.lane.b32.xlu0 %v427, 112
    %v831 = vpop.permute.xlu0 %830
    %832 = vrot.lane.b32.xlu0 %v424, 112
    %v833 = vpop.permute.xlu0 %832
    %834 = vrot.lane.b32.xlu0 %v428, 112
    %v835 = vpop.permute.xlu0 %834
    %836 = vrot.lane.b32.xlu0 %v425, 112
    %v837 = vpop.permute.xlu0 %836
    %838 = vrot.lane.b32.xlu0 %v429, 112
    %v839 = vpop.permute.xlu0 %838
    %v840 = vsel %vm259, %v833, %v837
    %v841 = vsel %vm259, %v835, %v839
    %v842 = vsel %vm259, %v829, %v833
    %v843 = vsel %vm259, %v831, %v835
    %v844 = vsel %vm259, %v825, %v829
    %v845 = vsel %vm259, %v827, %v831
    %v846 = vsel %vm259, %v837, %v825
    %v847 = vsel %vm259, %v839, %v827
    %v848 = vmul.f32 %v844, %v264
    %v849 = vmul.f32 %v842, %v265
    %v850 = vmul.f32 %v840, %v266
    %v851 = vmul.f32 %v846, %v267
    %v852 = vmul.f32 %v845, %v264
    %v853 = vmul.f32 %v843, %v265
    %v854 = vmul.f32 %v841, %v266
    %v855 = vmul.f32 %v847, %v267
    %856 = vrot.lane.b32.xlu0 %v422, 111
    %v857 = vpop.permute.xlu0 %856
    %858 = vrot.lane.b32.xlu0 %v426, 111
    %v859 = vpop.permute.xlu0 %858
    %860 = vrot.lane.b32.xlu0 %v423, 111
    %v861 = vpop.permute.xlu0 %860
    %862 = vrot.lane.b32.xlu0 %v427, 111
    %v863 = vpop.permute.xlu0 %862
    %864 = vrot.lane.b32.xlu0 %v424, 111
    %v865 = vpop.permute.xlu0 %864
    %866 = vrot.lane.b32.xlu0 %v428, 111
    %v867 = vpop.permute.xlu0 %866
    %868 = vrot.lane.b32.xlu0 %v425, 111
    %v869 = vpop.permute.xlu0 %868
    %870 = vrot.lane.b32.xlu0 %v429, 111
    %v871 = vpop.permute.xlu0 %870
    %v872 = vsel %vm280, %v865, %v869
    %v873 = vsel %vm280, %v867, %v871
    %v874 = vsel %vm280, %v861, %v865
    %v875 = vsel %vm280, %v863, %v867
    %v876 = vsel %vm280, %v857, %v861
    %v877 = vsel %vm280, %v859, %v863
    %v878 = vsel %vm280, %v869, %v857
    %v879 = vsel %vm280, %v871, %v859
    %v880 = vmul.f32 %v876, %v285
    %v881 = vmul.f32 %v874, %v286
    %v882 = vmul.f32 %v872, %v287
    %v883 = vmul.f32 %v878, %v288
    %v884 = vmul.f32 %v877, %v285
    %v885 = vmul.f32 %v875, %v286
    %v886 = vmul.f32 %v873, %v287
    %v887 = vmul.f32 %v879, %v288
    %s888 = scalar_lea.vmem [#allocation9], 32
    %v889 = vld [vmem:[%s888] sm:$0xff]
    %v890 = vld [vmem:[%s888 + $0x8] sm:$0xff]
    %v892 = vsel %vm595, %v889, 0
    %v895 = vsel %vm595, %v890, 0
    %897 = vmatpush.msra.mxu0 0.0
    %898 = vmatpush.msra.mxu0 0.0
    %899 = vmatpush.msra.mxu0 0.0
    %900 = vmatpush.msra.mxu0 0.0
    %901 = vmatpush.msra.mxu0 0.0
    %902 = vmatpush.msra.mxu0 0.0
    %903 = vmatpush.msra.mxu0 0.0
    %904 = vmatpush.msra.mxu0 0.0
    %905 = vmatpush.msra.mxu0 0.0
    %906 = vmatpush.msra.mxu0 0.0
    %907 = vmatpush.msra.mxu0 %v884
    %908 = vmatpush.msra.mxu0 %v880
    %909 = vmatpush.msra.mxu0 %v852
    %910 = vmatpush.msra.mxu0 %v848
    %911 = vmatpush.msra.mxu0 %v820
    %912 = vmatpush.msra.mxu0 %v816
    %913 = vmatmul.f32.gmra.mxu0 %v892
    %v914 = vpop.f32.mrf.mxu0
    %v915 = vadd.f32 0.0, %v914
    %916 = vmatmul.f32.gmra.mxu0 %v895
    %v917 = vpop.f32.mrf.mxu0
    %v918 = vadd.f32 0.0, %v917
    %919 = vdwg.mxu0
    %920 = vmatpush.msra.mxu0 0.0
    %921 = vmatpush.msra.mxu0 0.0
    %922 = vmatpush.msra.mxu0 0.0
    %923 = vmatpush.msra.mxu0 0.0
    %924 = vmatpush.msra.mxu0 0.0
    %925 = vmatpush.msra.mxu0 0.0
    %926 = vmatpush.msra.mxu0 0.0
    %927 = vmatpush.msra.mxu0 0.0
    %928 = vmatpush.msra.mxu0 0.0
    %929 = vmatpush.msra.mxu0 0.0
    %930 = vmatpush.msra.mxu0 %v885
    %931 = vmatpush.msra.mxu0 %v881
    %932 = vmatpush.msra.mxu0 %v853
    %933 = vmatpush.msra.mxu0 %v849
    %934 = vmatpush.msra.mxu0 %v821
    %935 = vmatpush.msra.mxu0 %v817
    %936 = vmatmul.f32.gmra.mxu0 %v892
    %v937 = vpop.f32.mrf.mxu0
    %v938 = vadd.f32 0.0, %v937
    %939 = vmatmul.f32.gmra.mxu0 %v895
    %v940 = vpop.f32.mrf.mxu0
    %v941 = vadd.f32 0.0, %v940
    %942 = vdwg.mxu0
    %943 = vmatpush.msra.mxu0 0.0
    %944 = vmatpush.msra.mxu0 0.0
    %945 = vmatpush.msra.mxu0 0.0
    %946 = vmatpush.msra.mxu0 0.0
    %947 = vmatpush.msra.mxu0 0.0
    %948 = vmatpush.msra.mxu0 0.0
    %949 = vmatpush.msra.mxu0 0.0
    %950 = vmatpush.msra.mxu0 0.0
    %951 = vmatpush.msra.mxu0 0.0
    %952 = vmatpush.msra.mxu0 0.0
    %953 = vmatpush.msra.mxu0 %v886
    %954 = vmatpush.msra.mxu0 %v882
    %955 = vmatpush.msra.mxu0 %v854
    %956 = vmatpush.msra.mxu0 %v850
    %957 = vmatpush.msra.mxu0 %v822
    %958 = vmatpush.msra.mxu0 %v818
    %959 = vmatmul.f32.gmra.mxu0 %v892
    %v960 = vpop.f32.mrf.mxu0
    %v961 = vadd.f32 0.0, %v960
    %962 = vmatmul.f32.gmra.mxu0 %v895
    %v963 = vpop.f32.mrf.mxu0
    %v964 = vadd.f32 0.0, %v963
    %965 = vdwg.mxu0
    %966 = vmatpush.msra.mxu0 0.0
    %967 = vmatpush.msra.mxu0 0.0
    %968 = vmatpush.msra.mxu0 0.0
    %969 = vmatpush.msra.mxu0 0.0
    %970 = vmatpush.msra.mxu0 0.0
    %971 = vmatpush.msra.mxu0 0.0
    %972 = vmatpush.msra.mxu0 0.0
    %973 = vmatpush.msra.mxu0 0.0
    %974 = vmatpush.msra.mxu0 0.0
    %975 = vmatpush.msra.mxu0 0.0
    %976 = vmatpush.msra.mxu0 %v887
    %977 = vmatpush.msra.mxu0 %v883
    %978 = vmatpush.msra.mxu0 %v855
    %979 = vmatpush.msra.mxu0 %v851
    %980 = vmatpush.msra.mxu0 %v823
    %981 = vmatpush.msra.mxu0 %v819
    %982 = vmatmul.f32.gmra.mxu0 %v892
    %v983 = vpop.f32.mrf.mxu0
    %v984 = vadd.f32 0.0, %v983
    %985 = vmatmul.f32.gmra.mxu0 %v895
    %v986 = vpop.f32.mrf.mxu0
    %v987 = vadd.f32 0.0, %v986
    %988 = vdwg.mxu0
    %v989 = vadd.f32 %v718, %v915
    %v990 = vadd.f32 %v741, %v938
    %v991 = vadd.f32 %v764, %v961
    %v992 = vadd.f32 %v787, %v984
    %v993 = vadd.f32 %v721, %v918
    %v994 = vadd.f32 %v744, %v941
    %v995 = vadd.f32 %v767, %v964
    %v996 = vadd.f32 %v790, %v987
    %v997 = vld [vmem:[%s6] sm:$0xff]
    %v998 = vld [vmem:[%s6 + $0x8] sm:$0xff]
    %1000 = vset.pattern.permute.xlu0 0
    %1001 = vperm.xlu0 %1000, %v997
    %v1002 = vpop.permute.xlu0 %1001
    %1005 = vset.pattern.permute.xlu0 0
    %1006 = vperm.xlu0 %1005, %v998
    %v1007 = vpop.permute.xlu0 %1006
    %v1009 = vadd.f32 %v989, %v1002
    %v1010 = vadd.f32 %v990, %v1002
    %v1011 = vadd.f32 %v991, %v1002
    %v1012 = vadd.f32 %v992, %v1002
    %v1013 = vadd.f32 %v993, %v1007
    %v1014 = vadd.f32 %v994, %v1007
    %v1015 = vadd.f32 %v995, %v1007
    %v1016 = vadd.f32 %v996, %v1007
    %vm1017 = vcmp.gt.f32.partialorder %v1009, 0.0
    %vm1018 = vcmp.gt.f32.partialorder %v1010, 0.0
    %vm1019 = vcmp.gt.f32.partialorder %v1011, 0.0
    %vm1020 = vcmp.gt.f32.partialorder %v1012, 0.0
    %vm1021 = vcmp.gt.f32.partialorder %v1013, 0.0
    %vm1022 = vcmp.gt.f32.partialorder %v1014, 0.0
    %vm1023 = vcmp.gt.f32.partialorder %v1015, 0.0
    %vm1024 = vcmp.gt.f32.partialorder %v1016, 0.0
    %v1025 = vmul.f32 %v1009, 0.2
    %v1026 = vmul.f32 %v1010, 0.2
    %v1027 = vmul.f32 %v1011, 0.2
    %v1028 = vmul.f32 %v1012, 0.2
    %v1029 = vmul.f32 %v1013, 0.2
    %v1030 = vmul.f32 %v1014, 0.2
    %v1031 = vmul.f32 %v1015, 0.2
    %v1032 = vmul.f32 %v1016, 0.2
    %v1033 = vsel %vm1017, %v1009, %v1025
    %v1034 = vsel %vm1018, %v1010, %v1026
    %v1035 = vsel %vm1019, %v1011, %v1027
    %v1036 = vsel %vm1020, %v1012, %v1028
    %v1037 = vsel %vm1021, %v1013, %v1029
    %v1038 = vsel %vm1022, %v1014, %v1030
    %v1039 = vsel %vm1023, %v1015, %v1031
    %v1040 = vsel %vm1024, %v1016, %v1032
    %v1041 = vld [vmem:[#allocation11] sm:$0xff]
    %v1042 = vld [vmem:[#allocation11 + $0x8] sm:$0x1]
    %vm1043 = vcmask 130048
    %v1045 = vsel %vm1043, %v1041, 0
    %v1048 = vsel %vm1043, %v1042, 0
    %1050 = vmatpush.msra.mxu0 0.0
    %1051 = vmatpush.msra.mxu0 0.0
    %1052 = vmatpush.msra.mxu0 0.0
    %1053 = vmatpush.msra.mxu0 0.0
    %1054 = vmatpush.msra.mxu0 0.0
    %1055 = vmatpush.msra.mxu0 0.0
    %1056 = vmatpush.msra.mxu0 0.0
    %1057 = vmatpush.msra.mxu0 0.0
    %1058 = vmatpush.msra.mxu0 0.0
    %1059 = vmatpush.msra.mxu0 0.0
    %1060 = vmatpush.msra.mxu0 0.0
    %1061 = vmatpush.msra.mxu0 0.0
    %1062 = vmatpush.msra.mxu0 0.0
    %1063 = vmatpush.msra.mxu0 0.0
    %1064 = vmatpush.msra.mxu0 %v1037
    %1065 = vmatpush.msra.mxu0 %v1033
    %1066 = vmatmul.f32.gmra.mxu0 %v1045
    %v1067 = vpop.f32.mrf.mxu0
    %v1068 = vadd.f32 0.0, %v1067
    %1069 = vmatmul.f32.gmra.mxu0 %v1048
    %v1070 = vpop.f32.mrf.mxu0
    %v1071 = vadd.f32 0.0, %v1070
    %1072 = vdwg.mxu0
    %1073 = vmatpush.msra.mxu0 0.0
    %1074 = vmatpush.msra.mxu0 0.0
    %1075 = vmatpush.msra.mxu0 0.0
    %1076 = vmatpush.msra.mxu0 0.0
    %1077 = vmatpush.msra.mxu0 0.0
    %1078 = vmatpush.msra.mxu0 0.0
    %1079 = vmatpush.msra.mxu0 0.0
    %1080 = vmatpush.msra.mxu0 0.0
    %1081 = vmatpush.msra.mxu0 0.0
    %1082 = vmatpush.msra.mxu0 0.0
    %1083 = vmatpush.msra.mxu0 0.0
    %1084 = vmatpush.msra.mxu0 0.0
    %1085 = vmatpush.msra.mxu0 0.0
    %1086 = vmatpush.msra.mxu0 0.0
    %1087 = vmatpush.msra.mxu0 %v1038
    %1088 = vmatpush.msra.mxu0 %v1034
    %1089 = vmatmul.f32.gmra.mxu0 %v1045
    %v1090 = vpop.f32.mrf.mxu0
    %v1091 = vadd.f32 0.0, %v1090
    %1092 = vmatmul.f32.gmra.mxu0 %v1048
    %v1093 = vpop.f32.mrf.mxu0
    %v1094 = vadd.f32 0.0, %v1093
    %1095 = vdwg.mxu0
    %1096 = vmatpush.msra.mxu0 0.0
    %1097 = vmatpush.msra.mxu0 0.0
    %1098 = vmatpush.msra.mxu0 0.0
    %1099 = vmatpush.msra.mxu0 0.0
    %1100 = vmatpush.msra.mxu0 0.0
    %1101 = vmatpush.msra.mxu0 0.0
    %1102 = vmatpush.msra.mxu0 0.0
    %1103 = vmatpush.msra.mxu0 0.0
    %1104 = vmatpush.msra.mxu0 0.0
    %1105 = vmatpush.msra.mxu0 0.0
    %1106 = vmatpush.msra.mxu0 0.0
    %1107 = vmatpush.msra.mxu0 0.0
    %1108 = vmatpush.msra.mxu0 0.0
    %1109 = vmatpush.msra.mxu0 0.0
    %1110 = vmatpush.msra.mxu0 %v1039
    %1111 = vmatpush.msra.mxu0 %v1035
    %1112 = vmatmul.f32.gmra.mxu0 %v1045
    %v1113 = vpop.f32.mrf.mxu0
    %v1114 = vadd.f32 0.0, %v1113
    %1115 = vmatmul.f32.gmra.mxu0 %v1048
    %v1116 = vpop.f32.mrf.mxu0
    %v1117 = vadd.f32 0.0, %v1116
    %1118 = vdwg.mxu0
    %1119 = vmatpush.msra.mxu0 0.0
    %1120 = vmatpush.msra.mxu0 0.0
    %1121 = vmatpush.msra.mxu0 0.0
    %1122 = vmatpush.msra.mxu0 0.0
    %1123 = vmatpush.msra.mxu0 0.0
    %1124 = vmatpush.msra.mxu0 0.0
    %1125 = vmatpush.msra.mxu0 0.0
    %1126 = vmatpush.msra.mxu0 0.0
    %1127 = vmatpush.msra.mxu0 0.0
    %1128 = vmatpush.msra.mxu0 0.0
    %1129 = vmatpush.msra.mxu0 0.0
    %1130 = vmatpush.msra.mxu0 0.0
    %1131 = vmatpush.msra.mxu0 0.0
    %1132 = vmatpush.msra.mxu0 0.0
    %1133 = vmatpush.msra.mxu0 %v1040
    %1134 = vmatpush.msra.mxu0 %v1036
    %1135 = vmatmul.f32.gmra.mxu0 %v1045
    %v1136 = vpop.f32.mrf.mxu0
    %v1137 = vadd.f32 0.0, %v1136
    %1138 = vmatmul.f32.gmra.mxu0 %v1048
    %v1139 = vpop.f32.mrf.mxu0
    %v1140 = vadd.f32 0.0, %v1139
    %1141 = vdwg.mxu0
    %1142 = vrot.lane.b32.xlu0 %v1068, 17
    %v1143 = vpop.permute.xlu0 %1142
    %1144 = vrot.lane.b32.xlu0 %v1091, 17
    %v1145 = vpop.permute.xlu0 %1144
    %1146 = vrot.lane.b32.xlu0 %v1114, 17
    %v1147 = vpop.permute.xlu0 %1146
    %1148 = vrot.lane.b32.xlu0 %v1137, 17
    %v1149 = vpop.permute.xlu0 %1148
    %v1150 = vsel %vm133, %v1147, %v1149
    %v1151 = vsel %vm133, %v1145, %v1147
    %v1152 = vsel %vm133, %v1143, %v1145
    %v1153 = vsel %vm133, %v1149, %v1143
    %v1154 = vmul.f32 %v1153, %v111
    %v1155 = vmul.f32 %v1152, %v112
    %v1156 = vmul.f32 %v1151, %v113
    %v1157 = vmul.f32 %v1150, %v114
    %v1162 = vrot.slane %v1154, 4
    %v1163 = vrot.slane %v1155, 4
    %v1164 = vrot.slane %v1156, 4
    %v1165 = vrot.slane %v1157, 4
    %v1170 = vadd.f32 %v1068, %v1162
    %v1171 = vadd.f32 %v1091, %v1163
    %v1172 = vadd.f32 %v1114, %v1164
    %v1173 = vadd.f32 %v1137, %v1165
    %v1178 = vrot.slane %v1068, 1
    %v1179 = vrot.slane %v1091, 1
    %v1180 = vrot.slane %v1114, 1
    %v1181 = vrot.slane %v1137, 1
    %1186 = vrot.lane.b32.xlu0 %v1178, 16
    %v1187 = vpop.permute.xlu0 %1186
    %1188 = vrot.lane.b32.xlu0 %v1179, 16
    %v1189 = vpop.permute.xlu0 %1188
    %1190 = vrot.lane.b32.xlu0 %v1180, 16
    %v1191 = vpop.permute.xlu0 %1190
    %1192 = vrot.lane.b32.xlu0 %v1181, 16
    %v1193 = vpop.permute.xlu0 %1192
    %v1194 = vsel %vm154, %v1191, %v1193
    %v1195 = vsel %vm154, %v1189, %v1191
    %v1196 = vsel %vm154, %v1187, %v1189
    %v1197 = vsel %vm154, %v1193, %v1187
    %v1202 = vrot.slane %v111, 1
    %v1203 = vrot.slane %v112, 1
    %v1204 = vrot.slane %v113, 1
    %v1205 = vrot.slane %v114, 1
    %v1210 = vmul.f32 %v1197, %v1202
    %v1211 = vmul.f32 %v1196, %v1203
    %v1212 = vmul.f32 %v1195, %v1204
    %v1213 = vmul.f32 %v1194, %v1205
    %v1218 = vrot.slane %v1210, 4
    %v1219 = vrot.slane %v1211, 4
    %v1220 = vrot.slane %v1212, 4
    %v1221 = vrot.slane %v1213, 4
    %v1226 = vadd.f32 %v1170, %v1218
    %v1227 = vadd.f32 %v1171, %v1219
    %v1228 = vadd.f32 %v1172, %v1220
    %v1229 = vadd.f32 %v1173, %v1221
    %v1230 = vrot.slane %v1068, 2
    %v1231 = vrot.slane %v1091, 2
    %v1232 = vrot.slane %v1114, 2
    %v1233 = vrot.slane %v1137, 2
    %1238 = vrot.lane.b32.xlu0 %v1230, 15
    %v1239 = vpop.permute.xlu0 %1238
    %1240 = vrot.lane.b32.xlu0 %v1231, 15
    %v1241 = vpop.permute.xlu0 %1240
    %1242 = vrot.lane.b32.xlu0 %v1232, 15
    %v1243 = vpop.permute.xlu0 %1242
    %1244 = vrot.lane.b32.xlu0 %v1233, 15
    %v1245 = vpop.permute.xlu0 %1244
    %v1246 = vsel %vm175, %v1243, %v1245
    %v1247 = vsel %vm175, %v1241, %v1243
    %v1248 = vsel %vm175, %v1239, %v1241
    %v1249 = vsel %vm175, %v1245, %v1239
    %v1250 = vrot.slane %v111, 2
    %v1251 = vrot.slane %v112, 2
    %v1252 = vrot.slane %v113, 2
    %v1253 = vrot.slane %v114, 2
    %v1258 = vmul.f32 %v1249, %v1250
    %v1259 = vmul.f32 %v1248, %v1251
    %v1260 = vmul.f32 %v1247, %v1252
    %v1261 = vmul.f32 %v1246, %v1253
    %v1266 = vrot.slane %v1258, 4
    %v1267 = vrot.slane %v1259, 4
    %v1268 = vrot.slane %v1260, 4
    %v1269 = vrot.slane %v1261, 4
    %v1274 = vadd.f32 %v1226, %v1266
    %v1275 = vadd.f32 %v1227, %v1267
    %v1276 = vadd.f32 %v1228, %v1268
    %v1277 = vadd.f32 %v1229, %v1269
    %v1278 = vrot.slane %v1068, 3
    %v1279 = vrot.slane %v1091, 3
    %v1280 = vrot.slane %v1114, 3
    %v1281 = vrot.slane %v1137, 3
    %1286 = vrot.lane.b32.xlu0 %v1278, 1
    %v1287 = vpop.permute.xlu0 %1286
    %1288 = vrot.lane.b32.xlu0 %v1279, 1
    %v1289 = vpop.permute.xlu0 %1288
    %1290 = vrot.lane.b32.xlu0 %v1280, 1
    %v1291 = vpop.permute.xlu0 %1290
    %1292 = vrot.lane.b32.xlu0 %v1281, 1
    %v1293 = vpop.permute.xlu0 %1292
    %v1294 = vsel %vm196, %v1291, %v1293
    %v1295 = vsel %vm196, %v1289, %v1291
    %v1296 = vsel %vm196, %v1287, %v1289
    %v1297 = vsel %vm196, %v1293, %v1287
    %v1298 = vrot.slane %v111, 3
    %v1299 = vrot.slane %v112, 3
    %v1300 = vrot.slane %v113, 3
    %v1301 = vrot.slane %v114, 3
    %v1306 = vmul.f32 %v1297, %v1298
    %v1307 = vmul.f32 %v1296, %v1299
    %v1308 = vmul.f32 %v1295, %v1300
    %v1309 = vmul.f32 %v1294, %v1301
    %v1314 = vrot.slane %v1306, 4
    %v1315 = vrot.slane %v1307, 4
    %v1316 = vrot.slane %v1308, 4
    %v1317 = vrot.slane %v1309, 4
    %v1322 = vadd.f32 %v1274, %v1314
    %v1323 = vadd.f32 %v1275, %v1315
    %v1324 = vadd.f32 %v1276, %v1316
    %v1325 = vadd.f32 %v1277, %v1317
    %v1326 = vrot.slane %v1068, 5
    %v1327 = vrot.slane %v1091, 5
    %v1328 = vrot.slane %v1114, 5
    %v1329 = vrot.slane %v1137, 5
    %1334 = vrot.lane.b32.xlu0 %v1326, 127
    %v1335 = vpop.permute.xlu0 %1334
    %1336 = vrot.lane.b32.xlu0 %v1327, 127
    %v1337 = vpop.permute.xlu0 %1336
    %1338 = vrot.lane.b32.xlu0 %v1328, 127
    %v1339 = vpop.permute.xlu0 %1338
    %1340 = vrot.lane.b32.xlu0 %v1329, 127
    %v1341 = vpop.permute.xlu0 %1340
    %v1342 = vsel %vm217, %v1339, %v1341
    %v1343 = vsel %vm217, %v1337, %v1339
    %v1344 = vsel %vm217, %v1335, %v1337
    %v1345 = vsel %vm217, %v1341, %v1335
    %v1346 = vrot.slane %v111, 5
    %v1347 = vrot.slane %v112, 5
    %v1348 = vrot.slane %v113, 5
    %v1349 = vrot.slane %v114, 5
    %v1354 = vmul.f32 %v1344, %v1346
    %v1355 = vmul.f32 %v1343, %v1347
    %v1356 = vmul.f32 %v1342, %v1348
    %v1357 = vmul.f32 %v1345, %v1349
    %v1362 = vrot.slane %v1354, 4
    %v1363 = vrot.slane %v1355, 4
    %v1364 = vrot.slane %v1356, 4
    %v1365 = vrot.slane %v1357, 4
    %v1370 = vadd.f32 %v1322, %v1362
    %v1371 = vadd.f32 %v1323, %v1363
    %v1372 = vadd.f32 %v1324, %v1364
    %v1373 = vadd.f32 %v1325, %v1365
    %v1374 = vrot.slane %v1068, 6
    %v1375 = vrot.slane %v1091, 6
    %v1376 = vrot.slane %v1114, 6
    %v1377 = vrot.slane %v1137, 6
    %1382 = vrot.lane.b32.xlu0 %v1374, 113
    %v1383 = vpop.permute.xlu0 %1382
    %1384 = vrot.lane.b32.xlu0 %v1375, 113
    %v1385 = vpop.permute.xlu0 %1384
    %1386 = vrot.lane.b32.xlu0 %v1376, 113
    %v1387 = vpop.permute.xlu0 %1386
    %1388 = vrot.lane.b32.xlu0 %v1377, 113
    %v1389 = vpop.permute.xlu0 %1388
    %v1390 = vsel %vm238, %v1387, %v1389
    %v1391 = vsel %vm238, %v1385, %v1387
    %v1392 = vsel %vm238, %v1383, %v1385
    %v1393 = vsel %vm238, %v1389, %v1383
    %v1394 = vrot.slane %v111, 6
    %v1395 = vrot.slane %v112, 6
    %v1396 = vrot.slane %v113, 6
    %v1397 = vrot.slane %v114, 6
    %v1402 = vmul.f32 %v1392, %v1394
    %v1403 = vmul.f32 %v1391, %v1395
    %v1404 = vmul.f32 %v1390, %v1396
    %v1405 = vmul.f32 %v1393, %v1397
    %v1410 = vrot.slane %v1402, 4
    %v1411 = vrot.slane %v1403, 4
    %v1412 = vrot.slane %v1404, 4
    %v1413 = vrot.slane %v1405, 4
    %v1418 = vadd.f32 %v1370, %v1410
    %v1419 = vadd.f32 %v1371, %v1411
    %v1420 = vadd.f32 %v1372, %v1412
    %v1421 = vadd.f32 %v1373, %v1413
    %v1422 = vrot.slane %v1068, 7
    %v1423 = vrot.slane %v1091, 7
    %v1424 = vrot.slane %v1114, 7
    %v1425 = vrot.slane %v1137, 7
    %1430 = vrot.lane.b32.xlu0 %v1422, 112
    %v1431 = vpop.permute.xlu0 %1430
    %1432 = vrot.lane.b32.xlu0 %v1423, 112
    %v1433 = vpop.permute.xlu0 %1432
    %1434 = vrot.lane.b32.xlu0 %v1424, 112
    %v1435 = vpop.permute.xlu0 %1434
    %1436 = vrot.lane.b32.xlu0 %v1425, 112
    %v1437 = vpop.permute.xlu0 %1436
    %v1438 = vsel %vm259, %v1435, %v1437
    %v1439 = vsel %vm259, %v1433, %v1435
    %v1440 = vsel %vm259, %v1431, %v1433
    %v1441 = vsel %vm259, %v1437, %v1431
    %v1442 = vrot.slane %v111, 7
    %v1443 = vrot.slane %v112, 7
    %v1444 = vrot.slane %v113, 7
    %v1445 = vrot.slane %v114, 7
    %v1450 = vmul.f32 %v1440, %v1442
    %v1451 = vmul.f32 %v1439, %v1443
    %v1452 = vmul.f32 %v1438, %v1444
    %v1453 = vmul.f32 %v1441, %v1445
    %v1458 = vrot.slane %v1450, 4
    %v1459 = vrot.slane %v1451, 4
    %v1460 = vrot.slane %v1452, 4
    %v1461 = vrot.slane %v1453, 4
    %v1466 = vadd.f32 %v1418, %v1458
    %v1467 = vadd.f32 %v1419, %v1459
    %v1468 = vadd.f32 %v1420, %v1460
    %v1469 = vadd.f32 %v1421, %v1461
    %1470 = vrot.lane.b32.xlu0 %v1071, 111
    %v1471 = vpop.permute.xlu0 %1470
    %1472 = vrot.lane.b32.xlu0 %v1094, 111
    %v1473 = vpop.permute.xlu0 %1472
    %1474 = vrot.lane.b32.xlu0 %v1117, 111
    %v1475 = vpop.permute.xlu0 %1474
    %1476 = vrot.lane.b32.xlu0 %v1140, 111
    %v1477 = vpop.permute.xlu0 %1476
    %v1478 = vsel %vm280, %v1475, %v1477
    %v1479 = vsel %vm280, %v1473, %v1475
    %v1480 = vsel %vm280, %v1471, %v1473
    %v1481 = vsel %vm280, %v1477, %v1471
    %v1482 = vmul.f32 %v1480, %v115
    %v1483 = vmul.f32 %v1479, %v116
    %v1484 = vmul.f32 %v1478, %v117
    %v1485 = vmul.f32 %v1481, %v118
    %v1490 = vrot.slane %v1482, 4
    %v1491 = vrot.slane %v1483, 4
    %v1492 = vrot.slane %v1484, 4
    %v1493 = vrot.slane %v1485, 4
    %v1498 = vadd.f32 %v1466, %v1490
    %v1499 = vadd.f32 %v1467, %v1491
    %v1500 = vadd.f32 %v1468, %v1492
    %v1501 = vadd.f32 %v1469, %v1493
    %v1502 = vld [vmem:[#allocation2] sm:$0x1]
    %1504 = vset.pattern.permute.xlu0 0
    %1505 = vperm.xlu0 %1504, %v1502
    %v1506 = vpop.permute.xlu0 %1505
    %v1508 = vperm.slane %v1506, 0
    %v1509 = vadd.f32 %v1498, %v1508
    %v1510 = vadd.f32 %v1499, %v1508
    %v1511 = vadd.f32 %v1500, %v1508
    %v1512 = vadd.f32 %v1501, %v1508
    %v1513 = vperm.slane %v1509, 4
    %v1514 = vperm.slane %v1510, 4
    %v1515 = vperm.slane %v1511, 4
    %v1516 = vperm.slane %v1512, 4
    %vm1517 = vcmask 1043456
    %v1518 = vsel %vm1517, %v1513, %v1515
    %v1519 = vsel %vm1517, %v1514, %v1516
    %v1520 = vld [vmem:[#allocation3] sm:$0xff]
    %v1521 = vld [vmem:[#allocation3 + $0x8] sm:$0xff]
    %v1522 = vadd.f32 %v1518, %v1520
    %v1523 = vadd.f32 %v1519, %v1521
    %1524 = vst [vmem:[#allocation12] sm:$0xff] %v1522
    %1525 = vst [vmem:[#allocation12 + $0x8] sm:$0xff] %v1523
    // Predicated region
    $region58: #{tpu_custom_call.1} parent=1 // pred_check
      _
    $region59: #{tpu_custom_call.1} parent=1 // pred_check_branch
      %1527 = sbr.rel (0) target = $region61
    $region60: #{tpu_custom_call.1} parent=1 // pred_region
      %1529 = vsyncadd [#allocation5], 0
      %s1531 = sshll.u32 [#allocation12], 4
      %s1532 = int_to_ptr.vmem [resolvable:$true] %s1531
      %s1533 = sshll.u32 %s9, 4
      %s1534 = int_to_ptr.hbm [resolvable:$true] %s1533
      %1536 = dma.vmem_to_hbm [thread:$0]  %s1532, 256, %s1534, [#allocation5]
    $region61: #{tpu_custom_call.1} parent=1 // pred_fallthru
      _
    // Predicated region
    $region62: #{tpu_custom_call.1} parent=1 // pred_check
      _
    $region63: #{tpu_custom_call.1} parent=1 // pred_check_branch
      %1538 = sbr.rel (0) target = $region65
    $region64: #{tpu_custom_call.1} parent=1 // pred_region
      %1540 = dma.done [#allocation5], 256
    $region65: #{tpu_custom_call.1} parent=1 // pred_fallthru
      _
    %1541 = vsyncpa [#allocation4], 1
    %1542 = vsyncpa [#allocation7], 1
    %1543 = vsyncpa [#allocation10], 1
    %1544 = vsyncpa [#allocation5], 1

</llo_original>
